<compile_context>
chip_gen: v5e
topology: v5e:2x2
jax: 0.10.0
libtpu: 0.0.40
codegen_flags: <defaults>
</compile_context>

<pallas_src>
import functools

import jax
import jax.numpy as jnp
from jax.experimental import pallas as pl
from jax.experimental.pallas import tpu as pltpu

EPS = 1e-5
H1 = 512       # l1 output width
H2 = 456       # logical l2 / bn_2 width
H2P = 512      # lane-padded l2 / bn_2 width
H3 = 128       # l3 output width
A_PAD = 128    # lane-padded action width


def _batchnorm_fused(h, gamma, beta):
    """PyTorch BatchNorm1d training semantics (biased batch var), as h*s + t."""
    mean = jnp.mean(h, axis=0, keepdims=True)
    ex2 = jnp.mean(h * h, axis=0, keepdims=True)
    var = jnp.maximum(ex2 - mean * mean, 0.0)
    s = gamma * jax.lax.rsqrt(var + EPS)
    t = beta - mean * s
    return h * s + t


def actor_kernel(x_ref,
                 g0_ref, be0_ref,
                 w1_ref, b1_ref,
                 w2_ref,
                 g2_ref, be2_ref,
                 w3_ref, b3_ref,
                 w4_ref, b4_ref,
                 o_ref):
    x = x_ref[...].astype(jnp.float32)

    # bn_0 (training-mode batch statistics)
    h = _batchnorm_fused(x, g0_ref[...], be0_ref[...])

    # l1 + relu  (bf16 MXU operands, f32 accumulation)
    h = jnp.dot(h.astype(jnp.bfloat16), w1_ref[...],
                preferred_element_type=jnp.float32) + b1_ref[...]
    h = jnp.maximum(h, 0.0)

    # l2 (bias omitted: bn_2's batch-mean subtraction cancels it exactly)
    h = jnp.dot(h.astype(jnp.bfloat16), w2_ref[...],
                preferred_element_type=jnp.float32)

    # bn_2 + relu  (padded cols are identically 0; w3's padded rows are 0,
    # so padding never affects the result)
    h = _batchnorm_fused(h, g2_ref[...], be2_ref[...])
    h = jnp.maximum(h, 0.0)

    # l3 + relu
    h = jnp.dot(h.astype(jnp.bfloat16), w3_ref[...],
                preferred_element_type=jnp.float32) + b3_ref[...]
    h = jnp.maximum(h, 0.0)

    # l4 + tanh  (output padded to 128 lanes -> unmasked store)
    h = jnp.dot(h.astype(jnp.bfloat16), w4_ref[...],
                preferred_element_type=jnp.float32) + b4_ref[...]
    o_ref[...] = jnp.tanh(h).astype(o_ref.dtype)


def _full_spec(arr):
    # Whole array as one VMEM block (small model; block == full array shape).
    return pl.BlockSpec(arr.shape, lambda: (0,) * arr.ndim)


@functools.partial(jax.jit, static_argnames=("action_dim",))
def actor_forward(x, params, action_dim):
    B, S = x.shape
    args = (x,
            params["g0"], params["be0"],
            params["w1"], params["b1"],
            params["w2"],
            params["g2"], params["be2"],
            params["w3"], params["b3"],
            params["w4"], params["b4"])

    flops = 2 * B * (S * H1 + H1 * H2P + H2P * H3 + H3 * A_PAD)
    bytes_accessed = (sum(int(a.size) * a.dtype.itemsize for a in args)
                      + B * A_PAD * 4)

    out = pl.pallas_call(
        actor_kernel,
        out_shape=jax.ShapeDtypeStruct((B, A_PAD), jnp.float32),
        in_specs=[_full_spec(a) for a in args],
        out_specs=pl.BlockSpec((B, A_PAD), lambda: (0, 0)),
        compiler_params=pltpu.CompilerParams(
            vmem_limit_bytes=32 * 1024 * 1024),
        cost_estimate=pl.CostEstimate(
            flops=flops,
            transcendentals=B * A_PAD,
            bytes_accessed=bytes_accessed),
    )(*args)
    return out[:, :action_dim]


def init_params(key, state_dim, action_dim):
    ks = jax.random.split(key, 12)
    f32 = jnp.float32

    def lin(kw, kb, fan_in, fan_out):
        bound = 1.0 / (fan_in ** 0.5)
        w = jax.random.uniform(kw, (fan_in, fan_out), f32, -bound, bound)
        b = jax.random.uniform(kb, (1, fan_out), f32, -bound, bound)
        return w, b

    w1, b1 = lin(ks[0], ks[1], state_dim, H1)
    w2, _b2 = lin(ks[2], ks[3], H1, H2)      # b2 is cancelled by bn_2 (training)
    w3, b3 = lin(ks[4], ks[5], H2, H3)
    w4, b4 = lin(ks[6], ks[7], H3, action_dim)

    g0 = 1.0 + 0.1 * jax.random.normal(ks[8], (1, state_dim), f32)
    be0 = 0.1 * jax.random.normal(ks[9], (1, state_dim), f32)
    g2 = 1.0 + 0.1 * jax.random.normal(ks[10], (1, H2), f32)
    be2 = 0.1 * jax.random.normal(ks[11], (1, H2), f32)

    # Lane padding: 456 -> 512 hidden width, action_dim -> 128 output width.
    w2p = jnp.zeros((H1, H2P), f32).at[:, :H2].set(w2)          # zero cols
    g2p = jnp.ones((1, H2P), f32).at[:, :H2].set(g2)
    be2p = jnp.zeros((1, H2P), f32).at[:, :H2].set(be2)
    w3p = jnp.zeros((H2P, H3), f32).at[:H2, :].set(w3)          # zero ROWS -> exact
    w4p = jnp.zeros((H3, A_PAD), f32).at[:, :action_dim].set(w4)
    b4p = jnp.zeros((1, A_PAD), f32).at[:, :action_dim].set(b4)

    bf16 = jnp.bfloat16
    return dict(g0=g0, be0=be0,
                w1=w1.astype(bf16), b1=b1,
                w2=w2p.astype(bf16),
                g2=g2p, be2=be2p,
                w3=w3p.astype(bf16), b3=b3,
                w4=w4p.astype(bf16), b4=b4p)


def reference_forward(x, p, action_dim):
    # Pure-JAX reference with identical numerics (bf16 matmul operands,
    # f32 accumulation, fused training-mode BN).
    h = _batchnorm_fused(x.astype(jnp.float32), p["g0"], p["be0"])
    h = jnp.maximum(jnp.dot(h.astype(jnp.bfloat16), p["w1"],
                            preferred_element_type=jnp.float32) + p["b1"], 0.0)
    h = jnp.dot(h.astype(jnp.bfloat16), p["w2"],
                preferred_element_type=jnp.float32)
    h = jnp.maximum(_batchnorm_fused(h, p["g2"], p["be2"]), 0.0)
    h = jnp.maximum(jnp.dot(h.astype(jnp.bfloat16), p["w3"],
                            preferred_element_type=jnp.float32) + p["b3"], 0.0)
    h = jnp.tanh(jnp.dot(h.astype(jnp.bfloat16), p["w4"],
                         preferred_element_type=jnp.float32) + p["b4"])
    return h[:, :action_dim]


if __name__ == "__main__":
    key = jax.random.PRNGKey(0)
    k_x, k_p = jax.random.split(key)

    batch, state_dim, action_dim = 8, 16, 4
    x = jax.random.normal(k_x, (batch, state_dim), jnp.float32)
    params = init_params(k_p, state_dim, action_dim)

    out = actor_forward(x, params, action_dim)
    out = jax.block_until_ready(out)

    ref = reference_forward(x, params, action_dim)
    assert out.shape == (batch, action_dim)
    assert jnp.allclose(out, ref, atol=2e-2, rtol=2e-2), "mismatch vs reference"

    print("KERNEL_OK")
</pallas_src>

<mosaic_0001>
module attributes {stable_mosaic.version = 11 : i64} {
  func.func @actor_kernel(%arg0: memref<8x16xf32, #tpu.memory_space<vmem>>, %arg1: memref<1x16xf32, #tpu.memory_space<vmem>>, %arg2: memref<1x16xf32, #tpu.memory_space<vmem>>, %arg3: memref<16x512xbf16, #tpu.memory_space<vmem>>, %arg4: memref<1x512xf32, #tpu.memory_space<vmem>>, %arg5: memref<512x512xbf16, #tpu.memory_space<vmem>>, %arg6: memref<1x512xf32, #tpu.memory_space<vmem>>, %arg7: memref<1x512xf32, #tpu.memory_space<vmem>>, %arg8: memref<512x128xbf16, #tpu.memory_space<vmem>>, %arg9: memref<1x128xf32, #tpu.memory_space<vmem>>, %arg10: memref<128x128xbf16, #tpu.memory_space<vmem>>, %arg11: memref<1x128xf32, #tpu.memory_space<vmem>>, %arg12: memref<8x128xf32, #tpu.memory_space<vmem>>) attributes {dimension_semantics = [], scalar_prefetch = 0 : i64, scratch_operands = 0 : i64, tpu.core_type = #tpu.core_type<tc>} {
    %c0 = arith.constant 0 : index
    %c0_0 = arith.constant 0 : index
    %0 = vector.load %arg0[%c0, %c0_0] : memref<8x16xf32, #tpu.memory_space<vmem>>, vector<8x16xf32>
    %c0_1 = arith.constant 0 : index
    %c0_2 = arith.constant 0 : index
    %1 = vector.load %arg1[%c0_1, %c0_2] : memref<1x16xf32, #tpu.memory_space<vmem>>, vector<1x16xf32>
    %c0_3 = arith.constant 0 : index
    %c0_4 = arith.constant 0 : index
    %2 = vector.load %arg2[%c0_3, %c0_4] : memref<1x16xf32, #tpu.memory_space<vmem>>, vector<1x16xf32>
    %cst = arith.constant dense<0.000000e+00> : vector<16xf32>
    %3 = vector.multi_reduction <add>, %0, %cst [0] : vector<8x16xf32> to vector<16xf32>
    %4 = vector.shape_cast %3 : vector<16xf32> to vector<1x16xf32>
    %cst_5 = arith.constant 8.000000e+00 : f32
    %5 = vector.broadcast %cst_5 : f32 to vector<1x16xf32>
    %6 = arith.divf %4, %5 : vector<1x16xf32>
    %7 = arith.mulf %0, %0 : vector<8x16xf32>
    %cst_6 = arith.constant dense<0.000000e+00> : vector<16xf32>
    %8 = vector.multi_reduction <add>, %7, %cst_6 [0] : vector<8x16xf32> to vector<16xf32>
    %9 = vector.shape_cast %8 : vector<16xf32> to vector<1x16xf32>
    %cst_7 = arith.constant 8.000000e+00 : f32
    %10 = vector.broadcast %cst_7 : f32 to vector<1x16xf32>
    %11 = arith.divf %9, %10 : vector<1x16xf32>
    %12 = arith.mulf %6, %6 : vector<1x16xf32>
    %13 = arith.subf %11, %12 : vector<1x16xf32>
    %cst_8 = arith.constant 0.000000e+00 : f32
    %14 = vector.broadcast %cst_8 : f32 to vector<1x16xf32>
    %15 = arith.maximumf %13, %14 : vector<1x16xf32>
    %cst_9 = arith.constant 9.99999974E-6 : f32
    %16 = vector.broadcast %cst_9 : f32 to vector<1x16xf32>
    %17 = arith.addf %15, %16 : vector<1x16xf32>
    %18 = math.rsqrt %17 : vector<1x16xf32>
    %19 = arith.mulf %1, %18 : vector<1x16xf32>
    %20 = arith.mulf %6, %19 : vector<1x16xf32>
    %21 = arith.subf %2, %20 : vector<1x16xf32>
    %22 = vector.broadcast %19 : vector<1x16xf32> to vector<8x16xf32>
    %23 = arith.mulf %0, %22 : vector<8x16xf32>
    %24 = vector.broadcast %21 : vector<1x16xf32> to vector<8x16xf32>
    %25 = arith.addf %23, %24 : vector<8x16xf32>
    %26 = arith.truncf %25 : vector<8x16xf32> to vector<8x16xbf16>
    %c0_10 = arith.constant 0 : index
    %c0_11 = arith.constant 0 : index
    %27 = vector.load %arg3[%c0_10, %c0_11] : memref<16x512xbf16, #tpu.memory_space<vmem>>, vector<16x512xbf16>
    %cst_12 = arith.constant dense<0.000000e+00> : vector<8x512xf32>
    %28 = tpu.matmul %26, %27, %cst_12 {dimension_numbers = #tpu.dot_dimension_numbers<[1], [0], [0], [1], [0, 0, 1, 1], [], []>} : vector<8x16xbf16>, vector<16x512xbf16>, vector<8x512xf32> -> vector<8x512xf32>
    %c0_13 = arith.constant 0 : index
    %c0_14 = arith.constant 0 : index
    %29 = vector.load %arg4[%c0_13, %c0_14] : memref<1x512xf32, #tpu.memory_space<vmem>>, vector<1x512xf32>
    %30 = vector.broadcast %29 : vector<1x512xf32> to vector<8x512xf32>
    %31 = arith.addf %28, %30 : vector<8x512xf32>
    %cst_15 = arith.constant 0.000000e+00 : f32
    %32 = vector.broadcast %cst_15 : f32 to vector<8x512xf32>
    %33 = arith.maximumf %31, %32 : vector<8x512xf32>
    %34 = arith.truncf %33 : vector<8x512xf32> to vector<8x512xbf16>
    %c0_16 = arith.constant 0 : index
    %c0_17 = arith.constant 0 : index
    %35 = vector.load %arg5[%c0_16, %c0_17] : memref<512x512xbf16, #tpu.memory_space<vmem>>, vector<512x512xbf16>
    %cst_18 = arith.constant dense<0.000000e+00> : vector<8x512xf32>
    %36 = tpu.matmul %34, %35, %cst_18 {dimension_numbers = #tpu.dot_dimension_numbers<[1], [0], [0], [1], [0, 0, 1, 1], [], []>} : vector<8x512xbf16>, vector<512x512xbf16>, vector<8x512xf32> -> vector<8x512xf32>
    %c0_19 = arith.constant 0 : index
    %c0_20 = arith.constant 0 : index
    %37 = vector.load %arg6[%c0_19, %c0_20] : memref<1x512xf32, #tpu.memory_space<vmem>>, vector<1x512xf32>
    %c0_21 = arith.constant 0 : index
    %c0_22 = arith.constant 0 : index
    %38 = vector.load %arg7[%c0_21, %c0_22] : memref<1x512xf32, #tpu.memory_space<vmem>>, vector<1x512xf32>
    %cst_23 = arith.constant dense<0.000000e+00> : vector<512xf32>
    %39 = vector.multi_reduction <add>, %36, %cst_23 [0] : vector<8x512xf32> to vector<512xf32>
    %40 = vector.shape_cast %39 : vector<512xf32> to vector<1x512xf32>
    %cst_24 = arith.constant 8.000000e+00 : f32
    %41 = vector.broadcast %cst_24 : f32 to vector<1x512xf32>
    %42 = arith.divf %40, %41 : vector<1x512xf32>
    %43 = arith.mulf %36, %36 : vector<8x512xf32>
    %cst_25 = arith.constant dense<0.000000e+00> : vector<512xf32>
    %44 = vector.multi_reduction <add>, %43, %cst_25 [0] : vector<8x512xf32> to vector<512xf32>
    %45 = vector.shape_cast %44 : vector<512xf32> to vector<1x512xf32>
    %cst_26 = arith.constant 8.000000e+00 : f32
    %46 = vector.broadcast %cst_26 : f32 to vector<1x512xf32>
    %47 = arith.divf %45, %46 : vector<1x512xf32>
    %48 = arith.mulf %42, %42 : vector<1x512xf32>
    %49 = arith.subf %47, %48 : vector<1x512xf32>
    %cst_27 = arith.constant 0.000000e+00 : f32
    %50 = vector.broadcast %cst_27 : f32 to vector<1x512xf32>
    %51 = arith.maximumf %49, %50 : vector<1x512xf32>
    %cst_28 = arith.constant 9.99999974E-6 : f32
    %52 = vector.broadcast %cst_28 : f32 to vector<1x512xf32>
    %53 = arith.addf %51, %52 : vector<1x512xf32>
    %54 = math.rsqrt %53 : vector<1x512xf32>
    %55 = arith.mulf %37, %54 : vector<1x512xf32>
    %56 = arith.mulf %42, %55 : vector<1x512xf32>
    %57 = arith.subf %38, %56 : vector<1x512xf32>
    %58 = vector.broadcast %55 : vector<1x512xf32> to vector<8x512xf32>
    %59 = arith.mulf %36, %58 : vector<8x512xf32>
    %60 = vector.broadcast %57 : vector<1x512xf32> to vector<8x512xf32>
    %61 = arith.addf %59, %60 : vector<8x512xf32>
    %cst_29 = arith.constant 0.000000e+00 : f32
    %62 = vector.broadcast %cst_29 : f32 to vector<8x512xf32>
    %63 = arith.maximumf %61, %62 : vector<8x512xf32>
    %64 = arith.truncf %63 : vector<8x512xf32> to vector<8x512xbf16>
    %c0_30 = arith.constant 0 : index
    %c0_31 = arith.constant 0 : index
    %65 = vector.load %arg8[%c0_30, %c0_31] : memref<512x128xbf16, #tpu.memory_space<vmem>>, vector<512x128xbf16>
    %cst_32 = arith.constant dense<0.000000e+00> : vector<8x128xf32>
    %66 = tpu.matmul %64, %65, %cst_32 {dimension_numbers = #tpu.dot_dimension_numbers<[1], [0], [0], [1], [0, 0, 1, 1], [], []>} : vector<8x512xbf16>, vector<512x128xbf16>, vector<8x128xf32> -> vector<8x128xf32>
    %c0_33 = arith.constant 0 : index
    %c0_34 = arith.constant 0 : index
    %67 = vector.load %arg9[%c0_33, %c0_34] : memref<1x128xf32, #tpu.memory_space<vmem>>, vector<1x128xf32>
    %68 = vector.broadcast %67 : vector<1x128xf32> to vector<8x128xf32>
    %69 = arith.addf %66, %68 : vector<8x128xf32>
    %cst_35 = arith.constant 0.000000e+00 : f32
    %70 = vector.broadcast %cst_35 : f32 to vector<8x128xf32>
    %71 = arith.maximumf %69, %70 : vector<8x128xf32>
    %72 = arith.truncf %71 : vector<8x128xf32> to vector<8x128xbf16>
    %c0_36 = arith.constant 0 : index
    %c0_37 = arith.constant 0 : index
    %73 = vector.load %arg10[%c0_36, %c0_37] : memref<128x128xbf16, #tpu.memory_space<vmem>>, vector<128x128xbf16>
    %cst_38 = arith.constant dense<0.000000e+00> : vector<8x128xf32>
    %74 = tpu.matmul %72, %73, %cst_38 {dimension_numbers = #tpu.dot_dimension_numbers<[1], [0], [0], [1], [0, 0, 1, 1], [], []>} : vector<8x128xbf16>, vector<128x128xbf16>, vector<8x128xf32> -> vector<8x128xf32>
    %c0_39 = arith.constant 0 : index
    %c0_40 = arith.constant 0 : index
    %75 = vector.load %arg11[%c0_39, %c0_40] : memref<1x128xf32, #tpu.memory_space<vmem>>, vector<1x128xf32>
    %76 = vector.broadcast %75 : vector<1x128xf32> to vector<8x128xf32>
    %77 = arith.addf %74, %76 : vector<8x128xf32>
    %78 = math.tanh %77 : vector<8x128xf32>
    %c0_41 = arith.constant 0 : index
    %c0_42 = arith.constant 0 : index
    %79 = vector.load %arg12[%c0_41, %c0_42] : memref<8x128xf32, #tpu.memory_space<vmem>>, vector<8x128xf32>
    tpu.vector_store %arg12[%c0_41, %c0_42], %78 {strides = array<i32>} : memref<8x128xf32, #tpu.memory_space<vmem>>, vector<8x128xf32>,
    return
  }
}

</mosaic_0001>

<llo_original>
// kernel: actor_forward.1
$region0: #{actor_forward.1}
  #allocation0 [shape = 'u32[]', space=smem, size = 0x4, offset = 0x4, fixed_abs, tag = 'smem constant byte address 0x4 - core index']
  #allocation1 [shape = 'u32[72,128]{1,0:T(1,128)}', space=vmem, size = 0x9000, scoped, tag = 'internal scratch']
  %s0 = inlined_call_operand.hbm [shape: f32[8,16], index: 0, kind: input, shape index: {}]
  %s1 = inlined_call_operand.vmem [shape: f32[1,16], index: 1, kind: input, shape index: {}]
  %s2 = inlined_call_operand.vmem [shape: f32[1,16], index: 2, kind: input, shape index: {}]
  %s3 = inlined_call_operand.hbm [shape: bf16[16,512], index: 3, kind: input, shape index: {}]
  %s4 = inlined_call_operand.hbm [shape: f32[1,512], index: 4, kind: input, shape index: {}]
  %s5 = inlined_call_operand.hbm [shape: bf16[512,512], index: 5, kind: input, shape index: {}]
  %s6 = inlined_call_operand.vmem [shape: f32[1,512], index: 6, kind: input, shape index: {}]
  %s7 = inlined_call_operand.hbm [shape: f32[1,512], index: 7, kind: input, shape index: {}]
  %s8 = inlined_call_operand.hbm [shape: bf16[512,128], index: 8, kind: input, shape index: {}]
  %s9 = inlined_call_operand.hbm [shape: f32[1,128], index: 9, kind: input, shape index: {}]
  %s10 = inlined_call_operand.hbm [shape: bf16[128,128], index: 10, kind: input, shape index: {}]
  %s11 = inlined_call_operand.hbm [shape: f32[1,128], index: 11, kind: input, shape index: {}]
  %s12 = inlined_call_operand.vmem [shape: f32[8,128], index: 12, kind: output, shape index: {}]
  %s13 = sld [smem:[#allocation0]]
  $region94: #{actor_forward.1} parent=0
    _
  %s15 = ssub.s32 1, %s13
  %s16 = scalar_select 0, %s15, %s13
  $region1: #{actor_forward.1} parent=0
    #allocation2 [shape = 'u8[4096]{0}', space=vmem, size = 0x1000, scoped, tag = 'input window, operand 0, single buffered']
    #allocation3 [shape = 's32[1]{0}', space=sflag, size = 0x4, scoped, tag = 'scoped memory for actor_forward.1']
    #allocation4 [shape = 'u8[16384]{0}', space=vmem, size = 0x4000, scoped, tag = 'input window, operand 3, single buffered']
    #allocation5 [shape = 's32[1]{0}', space=sflag, size = 0x4, scoped, tag = 'scoped memory for actor_forward.1']
    #allocation6 [shape = 'u8[2048]{0}', space=vmem, size = 0x800, scoped, tag = 'input window, operand 4, single buffered']
    #allocation7 [shape = 'u8[524288]{0}', space=vmem, size = 0x80000, scoped, tag = 'input window, operand 5, single buffered']
    #allocation8 [shape = 's32[1]{0}', space=sflag, size = 0x4, scoped, tag = 'scoped memory for actor_forward.1']
    #allocation9 [shape = 'u8[2048]{0}', space=vmem, size = 0x800, scoped, tag = 'input window, operand 7, single buffered']
    #allocation10 [shape = 'u8[131072]{0}', space=vmem, size = 0x20000, scoped, tag = 'input window, operand 8, single buffered']
    #allocation11 [shape = 's32[1]{0}', space=sflag, size = 0x4, scoped, tag = 'scoped memory for actor_forward.1']
    #allocation12 [shape = 'u8[512]{0}', space=vmem, size = 0x400, scoped, tag = 'input window, operand 9, single buffered']
    #allocation13 [shape = 'u8[32768]{0}', space=vmem, size = 0x8000, scoped, tag = 'input window, operand 10, single buffered']
    #allocation14 [shape = 's32[1]{0}', space=sflag, size = 0x4, scoped, tag = 'scoped memory for actor_forward.1']
    #allocation15 [shape = 'u8[512]{0}', space=vmem, size = 0x400, scoped, tag = 'input window, operand 11, single buffered']
    %17 = vsyncpa [#allocation3], 0
    %18 = vsyncpa [#allocation5], 0
    %19 = vsyncpa [#allocation8], 0
    %20 = vsyncpa [#allocation11], 0
    %21 = vsyncpa [#allocation14], 0
    // Predicated region
    $region2: #{actor_forward.1} parent=1 // pred_check
      _
    $region3: #{actor_forward.1} parent=1 // pred_check_branch
      %23 = sbr.rel (0) target = $region5
    $region4: #{actor_forward.1} parent=1 // pred_region
      %25 = vsyncadd [#allocation3], 0
      %s27 = sshll.u32 %s0, 4
      %s28 = int_to_ptr.hbm [resolvable:$true] %s27
      %s29 = sshll.u32 [#allocation2], 4
      %s30 = int_to_ptr.vmem [resolvable:$true] %s29
      %32 = dma.hbm_to_vmem [thread:$0]  %s28, 128, %s30, [#allocation3]
    $region5: #{actor_forward.1} parent=1 // pred_fallthru
      _
    // Predicated region
    $region6: #{actor_forward.1} parent=1 // pred_check
      _
    $region7: #{actor_forward.1} parent=1 // pred_check_branch
      %34 = sbr.rel (0) target = $region9
    $region8: #{actor_forward.1} parent=1 // pred_region
      _
    $region9: #{actor_forward.1} parent=1 // pred_fallthru
      _
    // Predicated region
    $region10: #{actor_forward.1} parent=1 // pred_check
      _
    $region11: #{actor_forward.1} parent=1 // pred_check_branch
      %36 = sbr.rel (0) target = $region13
    $region12: #{actor_forward.1} parent=1 // pred_region
      _
    $region13: #{actor_forward.1} parent=1 // pred_fallthru
      _
    // Predicated region
    $region14: #{actor_forward.1} parent=1 // pred_check
      _
    $region15: #{actor_forward.1} parent=1 // pred_check_branch
      %38 = sbr.rel (0) target = $region17
    $region16: #{actor_forward.1} parent=1 // pred_region
      %40 = vsyncadd [#allocation5], 0
      %s41 = sshll.u32 %s3, 4
      %s42 = int_to_ptr.hbm [resolvable:$true] %s41
      %s43 = sshll.u32 [#allocation4], 4
      %s44 = int_to_ptr.vmem [resolvable:$true] %s43
      %49 = dma.hbm_to_vmem [thread:$0]  %s42, 512, %s44, [#allocation5], 256, 256, 16
    $region17: #{actor_forward.1} parent=1 // pred_fallthru
      _
    // Predicated region
    $region18: #{actor_forward.1} parent=1 // pred_check
      _
    $region19: #{actor_forward.1} parent=1 // pred_check_branch
      %51 = sbr.rel (0) target = $region21
    $region20: #{actor_forward.1} parent=1 // pred_region
      %53 = vsyncadd [#allocation5], 0
      %s55 = sshll.u32 %s4, 4
      %s56 = int_to_ptr.hbm [resolvable:$true] %s55
      %s57 = sshll.u32 [#allocation6], 4
      %s58 = int_to_ptr.vmem [resolvable:$true] %s57
      %60 = dma.hbm_to_vmem [thread:$0]  %s56, 64, %s58, [#allocation5]
    $region21: #{actor_forward.1} parent=1 // pred_fallthru
      _
    // Predicated region
    $region22: #{actor_forward.1} parent=1 // pred_check
      _
    $region23: #{actor_forward.1} parent=1 // pred_check_branch
      %62 = sbr.rel (0) target = $region25
    $region24: #{actor_forward.1} parent=1 // pred_region
      %64 = vsyncadd [#allocation8], 0
      %s65 = sshll.u32 %s5, 4
      %s66 = int_to_ptr.hbm [resolvable:$true] %s65
      %s67 = sshll.u32 [#allocation7], 4
      %s68 = int_to_ptr.vmem [resolvable:$true] %s67
      %73 = dma.hbm_to_vmem [thread:$0]  %s66, 16384, %s68, [#allocation8], 256, 256, 16
    $region25: #{actor_forward.1} parent=1 // pred_fallthru
      _
    // Predicated region
    $region26: #{actor_forward.1} parent=1 // pred_check
      _
    $region27: #{actor_forward.1} parent=1 // pred_check_branch
      %75 = sbr.rel (0) target = $region29
    $region28: #{actor_forward.1} parent=1 // pred_region
      _
    $region29: #{actor_forward.1} parent=1 // pred_fallthru
      _
    // Predicated region
    $region30: #{actor_forward.1} parent=1 // pred_check
      _
    $region31: #{actor_forward.1} parent=1 // pred_check_branch
      %77 = sbr.rel (0) target = $region33
    $region32: #{actor_forward.1} parent=1 // pred_region
      %79 = vsyncadd [#allocation8], 0
      %s81 = sshll.u32 %s7, 4
      %s82 = int_to_ptr.hbm [resolvable:$true] %s81
      %s83 = sshll.u32 [#allocation9], 4
      %s84 = int_to_ptr.vmem [resolvable:$true] %s83
      %86 = dma.hbm_to_vmem [thread:$0]  %s82, 64, %s84, [#allocation8]
    $region33: #{actor_forward.1} parent=1 // pred_fallthru
      _
    // Predicated region
    $region34: #{actor_forward.1} parent=1 // pred_check
      _
    $region35: #{actor_forward.1} parent=1 // pred_check_branch
      %88 = sbr.rel (0) target = $region37
    $region36: #{actor_forward.1} parent=1 // pred_region
      %90 = vsyncadd [#allocation11], 0
      %s91 = sshll.u32 %s8, 4
      %s92 = int_to_ptr.hbm [resolvable:$true] %s91
      %s93 = sshll.u32 [#allocation10], 4
      %s94 = int_to_ptr.vmem [resolvable:$true] %s93
      %99 = dma.hbm_to_vmem [thread:$0]  %s92, 4096, %s94, [#allocation11], 64, 64, 4
    $region37: #{actor_forward.1} parent=1 // pred_fallthru
      _
    // Predicated region
    $region38: #{actor_forward.1} parent=1 // pred_check
      _
    $region39: #{actor_forward.1} parent=1 // pred_check_branch
      %101 = sbr.rel (0) target = $region41
    $region40: #{actor_forward.1} parent=1 // pred_region
      %103 = vsyncadd [#allocation11], 0
      %s105 = sshll.u32 %s9, 4
      %s106 = int_to_ptr.hbm [resolvable:$true] %s105
      %s107 = sshll.u32 [#allocation12], 4
      %s108 = int_to_ptr.vmem [resolvable:$true] %s107
      %110 = dma.hbm_to_vmem [thread:$0]  %s106, 16, %s108, [#allocation11]
    $region41: #{actor_forward.1} parent=1 // pred_fallthru
      _
    // Predicated region
    $region42: #{actor_forward.1} parent=1 // pred_check
      _
    $region43: #{actor_forward.1} parent=1 // pred_check_branch
      %112 = sbr.rel (0) target = $region45
    $region44: #{actor_forward.1} parent=1 // pred_region
      %114 = vsyncadd [#allocation14], 0
      %s115 = sshll.u32 %s10, 4
      %s116 = int_to_ptr.hbm [resolvable:$true] %s115
      %s117 = sshll.u32 [#allocation13], 4
      %s118 = int_to_ptr.vmem [resolvable:$true] %s117
      %123 = dma.hbm_to_vmem [thread:$0]  %s116, 1024, %s118, [#allocation14], 64, 64, 4
    $region45: #{actor_forward.1} parent=1 // pred_fallthru
      _
    // Predicated region
    $region46: #{actor_forward.1} parent=1 // pred_check
      _
    $region47: #{actor_forward.1} parent=1 // pred_check_branch
      %125 = sbr.rel (0) target = $region49
    $region48: #{actor_forward.1} parent=1 // pred_region
      %127 = vsyncadd [#allocation14], 0
      %s129 = sshll.u32 %s11, 4
      %s130 = int_to_ptr.hbm [resolvable:$true] %s129
      %s131 = sshll.u32 [#allocation15], 4
      %s132 = int_to_ptr.vmem [resolvable:$true] %s131
      %134 = dma.hbm_to_vmem [thread:$0]  %s130, 16, %s132, [#allocation14]
    $region49: #{actor_forward.1} parent=1 // pred_fallthru
      _
    // Predicated region
    $region50: #{actor_forward.1} parent=1 // pred_check
      _
    $region51: #{actor_forward.1} parent=1 // pred_check_branch
      %136 = sbr.rel (0) target = $region53
    $region52: #{actor_forward.1} parent=1 // pred_region
      %138 = dma.done [#allocation3], 128
    $region53: #{actor_forward.1} parent=1 // pred_fallthru
      _
    // Predicated region
    $region54: #{actor_forward.1} parent=1 // pred_check
      _
    $region55: #{actor_forward.1} parent=1 // pred_check_branch
      %140 = sbr.rel (0) target = $region57
    $region56: #{actor_forward.1} parent=1 // pred_region
      %142 = dma.done [#allocation5], 512
    $region57: #{actor_forward.1} parent=1 // pred_fallthru
      _
    // Predicated region
    $region58: #{actor_forward.1} parent=1 // pred_check
      _
    $region59: #{actor_forward.1} parent=1 // pred_check_branch
      %144 = sbr.rel (0) target = $region61
    $region60: #{actor_forward.1} parent=1 // pred_region
      %146 = dma.done [#allocation5], 64
    $region61: #{actor_forward.1} parent=1 // pred_fallthru
      _
    // Predicated region
    $region62: #{actor_forward.1} parent=1 // pred_check
      _
    $region63: #{actor_forward.1} parent=1 // pred_check_branch
      %148 = sbr.rel (0) target = $region65
    $region64: #{actor_forward.1} parent=1 // pred_region
      %150 = dma.done [#allocation8], 16384
    $region65: #{actor_forward.1} parent=1 // pred_fallthru
      _
    // Predicated region
    $region66: #{actor_forward.1} parent=1 // pred_check
      _
    $region67: #{actor_forward.1} parent=1 // pred_check_branch
      %152 = sbr.rel (0) target = $region69
    $region68: #{actor_forward.1} parent=1 // pred_region
      %154 = dma.done [#allocation8], 64
    $region69: #{actor_forward.1} parent=1 // pred_fallthru
      _
    // Predicated region
    $region70: #{actor_forward.1} parent=1 // pred_check
      _
    $region71: #{actor_forward.1} parent=1 // pred_check_branch
      %156 = sbr.rel (0) target = $region73
    $region72: #{actor_forward.1} parent=1 // pred_region
      %158 = dma.done [#allocation11], 4096
    $region73: #{actor_forward.1} parent=1 // pred_fallthru
      _
    // Predicated region
    $region74: #{actor_forward.1} parent=1 // pred_check
      _
    $region75: #{actor_forward.1} parent=1 // pred_check_branch
      %160 = sbr.rel (0) target = $region77
    $region76: #{actor_forward.1} parent=1 // pred_region
      %162 = dma.done [#allocation11], 16
    $region77: #{actor_forward.1} parent=1 // pred_fallthru
      _
    // Predicated region
    $region78: #{actor_forward.1} parent=1 // pred_check
      _
    $region79: #{actor_forward.1} parent=1 // pred_check_branch
      %164 = sbr.rel (0) target = $region81
    $region80: #{actor_forward.1} parent=1 // pred_region
      %166 = dma.done [#allocation14], 1024
    $region81: #{actor_forward.1} parent=1 // pred_fallthru
      _
    // Predicated region
    $region82: #{actor_forward.1} parent=1 // pred_check
      _
    $region83: #{actor_forward.1} parent=1 // pred_check_branch
      %168 = sbr.rel (0) target = $region85
    $region84: #{actor_forward.1} parent=1 // pred_region
      %170 = dma.done [#allocation14], 16
    $region85: #{actor_forward.1} parent=1 // pred_fallthru
      _
    %v172 = vld [vmem:[#allocation2] sm:$0xff]
    %v173 = vld [vmem:[%s1] sm:$0x1]
    %v174 = vld [vmem:[%s2] sm:$0x1]
    %vm175 = vcmask 130048
    %v176 = vsel %vm175, %v172, 0.0
    %v177 = vrot.slane %v176, 4
    %v178 = vadd.f32 %v176, %v177
    %v179 = vrot.slane %v178, 2
    %v180 = vadd.f32 %v178, %v179
    %v181 = vrot.slane %v180, 1
    %v182 = vadd.f32 %v180, %v181
    %v183 = vrcp.pop 8.0
    %v184 = vmul.f32 8.0, %v183
    %v185 = vsub.f32 1.0, %v184
    %v186 = vmul.f32 %v183, %v185
    %v187 = vadd.f32 %v183, %v186
    %vm188 = vweird.f32 %v183
    %v189 = vsel %vm188, %v183, %v187
    %v190 = vmul.f32 %v182, %v189
    %v191 = vmul.f32 %v172, %v172
    %v192 = vsel %vm175, %v191, 0.0
    %v193 = vrot.slane %v192, 4
    %v194 = vadd.f32 %v192, %v193
    %v195 = vrot.slane %v194, 2
    %v196 = vadd.f32 %v194, %v195
    %v197 = vrot.slane %v196, 1
    %v198 = vadd.f32 %v196, %v197
    %v199 = vmul.f32 %v198, %v189
    %v200 = vmul.f32 %v190, %v190
    %v201 = vsub.f32 %v199, %v200
    %v202 = vmax.f32 %v201, 0.0
    %v203 = vadd.f32 %v202, 1e-05
    %v204 = vrsqrt.pop %v203
    %v205 = vmul.f32 %v204, %v203
    %v206 = vmul.f32 %v205, %v204
    %v207 = vmul.f32 0.5, %v206
    %v208 = vsub.f32 1.5, %v207
    %v209 = vmul.f32 %v204, %v208
    %vm210 = vweird.f32 %v203
    %vm211 = vweird.f32 %v204
    %vm212 = vmor %vm210, %vm211
    %v213 = vsel %vm212, %v204, %v209
    %v214 = vmul.f32 %v173, %v213
    %v215 = vmul.f32 %v190, %v214
    %v216 = vsub.f32 %v174, %v215
    %v218 = vperm.slane %v214, 0
    %v220 = vmul.f32 %v172, %v218
    %v222 = vperm.slane %v216, 0
    %v224 = vadd.f32 %v220, %v222
    %v225 = vpack.c.bf16 %v224, %v224
    %v226 = vld [vmem:[#allocation4] sm:$0xff]
    %v227 = vld [vmem:[#allocation4 + $0x8] sm:$0xff]
    %v228 = vld [vmem:[#allocation4 + $0x10] sm:$0xff]
    %v229 = vld [vmem:[#allocation4 + $0x18] sm:$0xff]
    %v230 = vld [vmem:[#allocation6] sm:$0xf]
    %v232 = vperm.slane %v230, 0
    %v233 = vperm.slane %v230, 1
    %v234 = vperm.slane %v230, 2
    %v235 = vperm.slane %v230, 3
    %v244 = vunpack.c.l.b16 %v226
    %v245 = vunpack.c.h.b16 %v226
    %v246 = vunpack.c.l.b16 %v227
    %v247 = vunpack.c.h.b16 %v227
    %v248 = vunpack.c.l.b16 %v228
    %v249 = vunpack.c.h.b16 %v228
    %v250 = vunpack.c.l.b16 %v229
    %v251 = vunpack.c.h.b16 %v229
    %v252 = vpack.c.b16 %v248, %v244
    %v253 = vpack.c.b16 %v249, %v245
    %v254 = vpack.c.b16 %v250, %v246
    %v255 = vpack.c.b16 %v251, %v247
    %v261 = vsel %vm175, %v225, 0
    %263 = vmatpush.bf16.msra.mxu0 0
    %264 = vmatpush.bf16.msra.mxu0 0
    %265 = vmatpush.bf16.msra.mxu0 0
    %266 = vmatpush.bf16.msra.mxu0 0
    %267 = vmatpush.bf16.msra.mxu0 0
    %268 = vmatpush.bf16.msra.mxu0 0
    %269 = vmatpush.bf16.msra.mxu0 0
    %270 = vmatpush.bf16.msra.mxu0 %v252
    %271 = vmatmul.bf16.gmra.mxu0 %v261
    %v272 = vpop.f32.mrf.mxu0
    %v273 = vadd.f32 %v232, %v272
    %v274 = vpop.f32.mrf.mxu0
    %275 = vdwg.mxu0
    %276 = vmatpush.bf16.msra.mxu0 0
    %277 = vmatpush.bf16.msra.mxu0 0
    %278 = vmatpush.bf16.msra.mxu0 0
    %279 = vmatpush.bf16.msra.mxu0 0
    %280 = vmatpush.bf16.msra.mxu0 0
    %281 = vmatpush.bf16.msra.mxu0 0
    %282 = vmatpush.bf16.msra.mxu0 0
    %283 = vmatpush.bf16.msra.mxu0 %v253
    %284 = vmatmul.bf16.gmra.mxu0 %v261
    %v285 = vpop.f32.mrf.mxu0
    %v286 = vadd.f32 %v233, %v285
    %v287 = vpop.f32.mrf.mxu0
    %288 = vdwg.mxu0
    %289 = vmatpush.bf16.msra.mxu0 0
    %290 = vmatpush.bf16.msra.mxu0 0
    %291 = vmatpush.bf16.msra.mxu0 0
    %292 = vmatpush.bf16.msra.mxu0 0
    %293 = vmatpush.bf16.msra.mxu0 0
    %294 = vmatpush.bf16.msra.mxu0 0
    %295 = vmatpush.bf16.msra.mxu0 0
    %296 = vmatpush.bf16.msra.mxu0 %v254
    %297 = vmatmul.bf16.gmra.mxu0 %v261
    %v298 = vpop.f32.mrf.mxu0
    %v299 = vadd.f32 %v234, %v298
    %v300 = vpop.f32.mrf.mxu0
    %301 = vdwg.mxu0
    %302 = vmatpush.bf16.msra.mxu0 0
    %303 = vmatpush.bf16.msra.mxu0 0
    %304 = vmatpush.bf16.msra.mxu0 0
    %305 = vmatpush.bf16.msra.mxu0 0
    %306 = vmatpush.bf16.msra.mxu0 0
    %307 = vmatpush.bf16.msra.mxu0 0
    %308 = vmatpush.bf16.msra.mxu0 0
    %309 = vmatpush.bf16.msra.mxu0 %v255
    %310 = vmatmul.bf16.gmra.mxu0 %v261
    %v311 = vpop.f32.mrf.mxu0
    %v312 = vadd.f32 %v235, %v311
    %v313 = vpop.f32.mrf.mxu0
    %314 = vdwg.mxu0
    %v315 = vmax.f32 %v273, 0.0
    %v316 = vmax.f32 %v286, 0.0
    %v317 = vmax.f32 %v299, 0.0
    %v318 = vmax.f32 %v312, 0.0
    %v319 = vpack.c.bf16 %v315, %v315
    %v320 = vpack.c.bf16 %v316, %v316
    %v321 = vpack.c.bf16 %v317, %v317
    %v322 = vpack.c.bf16 %v318, %v318
    %v323 = vld [vmem:[#allocation7] sm:$0xff]
    %v324 = vld [vmem:[#allocation7 + $0x8] sm:$0xff]
    %v325 = vld [vmem:[#allocation7 + $0x10] sm:$0xff]
    %v326 = vld [vmem:[#allocation7 + $0x18] sm:$0xff]
    %v327 = vld [vmem:[#allocation7 + $0x20] sm:$0xff]
    %v328 = vld [vmem:[#allocation7 + $0x28] sm:$0xff]
    %v329 = vld [vmem:[#allocation7 + $0x30] sm:$0xff]
    %v330 = vld [vmem:[#allocation7 + $0x38] sm:$0xff]
    %v331 = vld [vmem:[#allocation7 + $0x40] sm:$0xff]
    %v332 = vld [vmem:[#allocation7 + $0x48] sm:$0xff]
    %v333 = vld [vmem:[#allocation7 + $0x50] sm:$0xff]
    %v334 = vld [vmem:[#allocation7 + $0x58] sm:$0xff]
    %v335 = vld [vmem:[#allocation7 + $0x60] sm:$0xff]
    %v336 = vld [vmem:[#allocation7 + $0x68] sm:$0xff]
    %v337 = vld [vmem:[#allocation7 + $0x70] sm:$0xff]
    %v338 = vld [vmem:[#allocation7 + $0x78] sm:$0xff]
    %v339 = vld [vmem:[#allocation7 + $0x80] sm:$0xff]
    %v340 = vld [vmem:[#allocation7 + $0x88] sm:$0xff]
    %v341 = vld [vmem:[#allocation7 + $0x90] sm:$0xff]
    %v342 = vld [vmem:[#allocation7 + $0x98] sm:$0xff]
    %v343 = vld [vmem:[#allocation7 + $0xa0] sm:$0xff]
    %v344 = vld [vmem:[#allocation7 + $0xa8] sm:$0xff]
    %v345 = vld [vmem:[#allocation7 + $0xb0] sm:$0xff]
    %v346 = vld [vmem:[#allocation7 + $0xb8] sm:$0xff]
    %v347 = vld [vmem:[#allocation7 + $0xc0] sm:$0xff]
    %v348 = vld [vmem:[#allocation7 + $0xc8] sm:$0xff]
    %v349 = vld [vmem:[#allocation7 + $0xd0] sm:$0xff]
    %v350 = vld [vmem:[#allocation7 + $0xd8] sm:$0xff]
    %v351 = vld [vmem:[#allocation7 + $0xe0] sm:$0xff]
    %v352 = vld [vmem:[#allocation7 + $0xe8] sm:$0xff]
    %v353 = vld [vmem:[#allocation7 + $0xf0] sm:$0xff]
    %v354 = vld [vmem:[#allocation7 + $0xf8] sm:$0xff]
    %v355 = vld [vmem:[#allocation7 + $0x100] sm:$0xff]
    %v356 = vld [vmem:[#allocation7 + $0x108] sm:$0xff]
    %v357 = vld [vmem:[#allocation7 + $0x110] sm:$0xff]
    %v358 = vld [vmem:[#allocation7 + $0x118] sm:$0xff]
    %v359 = vld [vmem:[#allocation7 + $0x120] sm:$0xff]
    %v360 = vld [vmem:[#allocation7 + $0x128] sm:$0xff]
    %v361 = vld [vmem:[#allocation7 + $0x130] sm:$0xff]
    %v362 = vld [vmem:[#allocation7 + $0x138] sm:$0xff]
    %v363 = vld [vmem:[#allocation7 + $0x140] sm:$0xff]
    %v364 = vld [vmem:[#allocation7 + $0x148] sm:$0xff]
    %v365 = vld [vmem:[#allocation7 + $0x150] sm:$0xff]
    %v366 = vld [vmem:[#allocation7 + $0x158] sm:$0xff]
    %v367 = vld [vmem:[#allocation7 + $0x160] sm:$0xff]
    %v368 = vld [vmem:[#allocation7 + $0x168] sm:$0xff]
    %v369 = vld [vmem:[#allocation7 + $0x170] sm:$0xff]
    %v370 = vld [vmem:[#allocation7 + $0x178] sm:$0xff]
    %v371 = vld [vmem:[#allocation7 + $0x180] sm:$0xff]
    %v372 = vld [vmem:[#allocation7 + $0x188] sm:$0xff]
    %v373 = vld [vmem:[#allocation7 + $0x190] sm:$0xff]
    %v374 = vld [vmem:[#allocation7 + $0x198] sm:$0xff]
    %v375 = vld [vmem:[#allocation7 + $0x1a0] sm:$0xff]
    %v376 = vld [vmem:[#allocation7 + $0x1a8] sm:$0xff]
    %v377 = vld [vmem:[#allocation7 + $0x1b0] sm:$0xff]
    %v378 = vld [vmem:[#allocation7 + $0x1b8] sm:$0xff]
    %v379 = vld [vmem:[#allocation7 + $0x1c0] sm:$0xff]
    %v380 = vld [vmem:[#allocation7 + $0x1c8] sm:$0xff]
    %v381 = vld [vmem:[#allocation7 + $0x1d0] sm:$0xff]
    %v382 = vld [vmem:[#allocation7 + $0x1d8] sm:$0xff]
    %v383 = vld [vmem:[#allocation7 + $0x1e0] sm:$0xff]
    %v384 = vld [vmem:[#allocation7 + $0x1e8] sm:$0xff]
    %v385 = vld [vmem:[#allocation7 + $0x1f0] sm:$0xff]
    %v386 = vld [vmem:[#allocation7 + $0x1f8] sm:$0xff]
    %v387 = vld [vmem:[#allocation7 + $0x200] sm:$0xff]
    %v388 = vld [vmem:[#allocation7 + $0x208] sm:$0xff]
    %v389 = vld [vmem:[#allocation7 + $0x210] sm:$0xff]
    %v390 = vld [vmem:[#allocation7 + $0x218] sm:$0xff]
    %v391 = vld [vmem:[#allocation7 + $0x220] sm:$0xff]
    %v392 = vld [vmem:[#allocation7 + $0x228] sm:$0xff]
    %v393 = vld [vmem:[#allocation7 + $0x230] sm:$0xff]
    %v394 = vld [vmem:[#allocation7 + $0x238] sm:$0xff]
    %v395 = vld [vmem:[#allocation7 + $0x240] sm:$0xff]
    %v396 = vld [vmem:[#allocation7 + $0x248] sm:$0xff]
    %v397 = vld [vmem:[#allocation7 + $0x250] sm:$0xff]
    %v398 = vld [vmem:[#allocation7 + $0x258] sm:$0xff]
    %v399 = vld [vmem:[#allocation7 + $0x260] sm:$0xff]
    %v400 = vld [vmem:[#allocation7 + $0x268] sm:$0xff]
    %v401 = vld [vmem:[#allocation7 + $0x270] sm:$0xff]
    %v402 = vld [vmem:[#allocation7 + $0x278] sm:$0xff]
    %v403 = vld [vmem:[#allocation7 + $0x280] sm:$0xff]
    %v404 = vld [vmem:[#allocation7 + $0x288] sm:$0xff]
    %v405 = vld [vmem:[#allocation7 + $0x290] sm:$0xff]
    %v406 = vld [vmem:[#allocation7 + $0x298] sm:$0xff]
    %v407 = vld [vmem:[#allocation7 + $0x2a0] sm:$0xff]
    %v408 = vld [vmem:[#allocation7 + $0x2a8] sm:$0xff]
    %v409 = vld [vmem:[#allocation7 + $0x2b0] sm:$0xff]
    %v410 = vld [vmem:[#allocation7 + $0x2b8] sm:$0xff]
    %v411 = vld [vmem:[#allocation7 + $0x2c0] sm:$0xff]
    %v412 = vld [vmem:[#allocation7 + $0x2c8] sm:$0xff]
    %v413 = vld [vmem:[#allocation7 + $0x2d0] sm:$0xff]
    %v414 = vld [vmem:[#allocation7 + $0x2d8] sm:$0xff]
    %v415 = vld [vmem:[#allocation7 + $0x2e0] sm:$0xff]
    %v416 = vld [vmem:[#allocation7 + $0x2e8] sm:$0xff]
    %v417 = vld [vmem:[#allocation7 + $0x2f0] sm:$0xff]
    %v418 = vld [vmem:[#allocation7 + $0x2f8] sm:$0xff]
    %v419 = vld [vmem:[#allocation7 + $0x300] sm:$0xff]
    %v420 = vld [vmem:[#allocation7 + $0x308] sm:$0xff]
    %v421 = vld [vmem:[#allocation7 + $0x310] sm:$0xff]
    %v422 = vld [vmem:[#allocation7 + $0x318] sm:$0xff]
    %v423 = vld [vmem:[#allocation7 + $0x320] sm:$0xff]
    %v424 = vld [vmem:[#allocation7 + $0x328] sm:$0xff]
    %v425 = vld [vmem:[#allocation7 + $0x330] sm:$0xff]
    %v426 = vld [vmem:[#allocation7 + $0x338] sm:$0xff]
    %v427 = vld [vmem:[#allocation7 + $0x340] sm:$0xff]
    %v428 = vld [vmem:[#allocation7 + $0x348] sm:$0xff]
    %v429 = vld [vmem:[#allocation7 + $0x350] sm:$0xff]
    %v430 = vld [vmem:[#allocation7 + $0x358] sm:$0xff]
    %v431 = vld [vmem:[#allocation7 + $0x360] sm:$0xff]
    %v432 = vld [vmem:[#allocation7 + $0x368] sm:$0xff]
    %v433 = vld [vmem:[#allocation7 + $0x370] sm:$0xff]
    %v434 = vld [vmem:[#allocation7 + $0x378] sm:$0xff]
    %v435 = vld [vmem:[#allocation7 + $0x380] sm:$0xff]
    %v436 = vld [vmem:[#allocation7 + $0x388] sm:$0xff]
    %v437 = vld [vmem:[#allocation7 + $0x390] sm:$0xff]
    %v438 = vld [vmem:[#allocation7 + $0x398] sm:$0xff]
    %v439 = vld [vmem:[#allocation7 + $0x3a0] sm:$0xff]
    %v440 = vld [vmem:[#allocation7 + $0x3a8] sm:$0xff]
    %v441 = vld [vmem:[#allocation7 + $0x3b0] sm:$0xff]
    %v442 = vld [vmem:[#allocation7 + $0x3b8] sm:$0xff]
    %v443 = vld [vmem:[#allocation7 + $0x3c0] sm:$0xff]
    %v444 = vld [vmem:[#allocation7 + $0x3c8] sm:$0xff]
    %v445 = vld [vmem:[#allocation7 + $0x3d0] sm:$0xff]
    %v446 = vld [vmem:[#allocation7 + $0x3d8] sm:$0xff]
    %v447 = vld [vmem:[#allocation7 + $0x3e0] sm:$0xff]
    %v448 = vld [vmem:[#allocation7 + $0x3e8] sm:$0xff]
    %v449 = vld [vmem:[#allocation7 + $0x3f0] sm:$0xff]
    %v450 = vld [vmem:[#allocation7 + $0x3f8] sm:$0xff]
    %v579 = vunpack.c.l.b16 %v323
    %v580 = vunpack.c.h.b16 %v323
    %v581 = vunpack.c.l.b16 %v324
    %v582 = vunpack.c.h.b16 %v324
    %v583 = vunpack.c.l.b16 %v325
    %v584 = vunpack.c.h.b16 %v325
    %v585 = vunpack.c.l.b16 %v326
    %v586 = vunpack.c.h.b16 %v326
    %v587 = vunpack.c.l.b16 %v327
    %v588 = vunpack.c.h.b16 %v327
    %v589 = vunpack.c.l.b16 %v328
    %v590 = vunpack.c.h.b16 %v328
    %v591 = vunpack.c.l.b16 %v329
    %v592 = vunpack.c.h.b16 %v329
    %v593 = vunpack.c.l.b16 %v330
    %v594 = vunpack.c.h.b16 %v330
    %v595 = vunpack.c.l.b16 %v331
    %v596 = vunpack.c.h.b16 %v331
    %v597 = vunpack.c.l.b16 %v332
    %v598 = vunpack.c.h.b16 %v332
    %v599 = vunpack.c.l.b16 %v333
    %v600 = vunpack.c.h.b16 %v333
    %v601 = vunpack.c.l.b16 %v334
    %v602 = vunpack.c.h.b16 %v334
    %v603 = vunpack.c.l.b16 %v335
    %v604 = vunpack.c.h.b16 %v335
    %v605 = vunpack.c.l.b16 %v336
    %v606 = vunpack.c.h.b16 %v336
    %v607 = vunpack.c.l.b16 %v337
    %v608 = vunpack.c.h.b16 %v337
    %v609 = vunpack.c.l.b16 %v338
    %v610 = vunpack.c.h.b16 %v338
    %v611 = vunpack.c.l.b16 %v339
    %v612 = vunpack.c.h.b16 %v339
    %v613 = vunpack.c.l.b16 %v340
    %v614 = vunpack.c.h.b16 %v340
    %v615 = vunpack.c.l.b16 %v341
    %v616 = vunpack.c.h.b16 %v341
    %v617 = vunpack.c.l.b16 %v342
    %v618 = vunpack.c.h.b16 %v342
    %v619 = vunpack.c.l.b16 %v343
    %v620 = vunpack.c.h.b16 %v343
    %v621 = vunpack.c.l.b16 %v344
    %v622 = vunpack.c.h.b16 %v344
    %v623 = vunpack.c.l.b16 %v345
    %v624 = vunpack.c.h.b16 %v345
    %v625 = vunpack.c.l.b16 %v346
    %v626 = vunpack.c.h.b16 %v346
    %v627 = vunpack.c.l.b16 %v347
    %v628 = vunpack.c.h.b16 %v347
    %v629 = vunpack.c.l.b16 %v348
    %v630 = vunpack.c.h.b16 %v348
    %v631 = vunpack.c.l.b16 %v349
    %v632 = vunpack.c.h.b16 %v349
    %v633 = vunpack.c.l.b16 %v350
    %v634 = vunpack.c.h.b16 %v350
    %v635 = vunpack.c.l.b16 %v351
    %v636 = vunpack.c.h.b16 %v351
    %v637 = vunpack.c.l.b16 %v352
    %v638 = vunpack.c.h.b16 %v352
    %v639 = vunpack.c.l.b16 %v353
    %v640 = vunpack.c.h.b16 %v353
    %v641 = vunpack.c.l.b16 %v354
    %v642 = vunpack.c.h.b16 %v354
    %v643 = vunpack.c.l.b16 %v355
    %v644 = vunpack.c.h.b16 %v355
    %v645 = vunpack.c.l.b16 %v356
    %v646 = vunpack.c.h.b16 %v356
    %v647 = vunpack.c.l.b16 %v357
    %v648 = vunpack.c.h.b16 %v357
    %v649 = vunpack.c.l.b16 %v358
    %v650 = vunpack.c.h.b16 %v358
    %v651 = vunpack.c.l.b16 %v359
    %v652 = vunpack.c.h.b16 %v359
    %v653 = vunpack.c.l.b16 %v360
    %v654 = vunpack.c.h.b16 %v360
    %v655 = vunpack.c.l.b16 %v361
    %v656 = vunpack.c.h.b16 %v361
    %v657 = vunpack.c.l.b16 %v362
    %v658 = vunpack.c.h.b16 %v362
    %v659 = vunpack.c.l.b16 %v363
    %v660 = vunpack.c.h.b16 %v363
    %v661 = vunpack.c.l.b16 %v364
    %v662 = vunpack.c.h.b16 %v364
    %v663 = vunpack.c.l.b16 %v365
    %v664 = vunpack.c.h.b16 %v365
    %v665 = vunpack.c.l.b16 %v366
    %v666 = vunpack.c.h.b16 %v366
    %v667 = vunpack.c.l.b16 %v367
    %v668 = vunpack.c.h.b16 %v367
    %v669 = vunpack.c.l.b16 %v368
    %v670 = vunpack.c.h.b16 %v368
    %v671 = vunpack.c.l.b16 %v369
    %v672 = vunpack.c.h.b16 %v369
    %v673 = vunpack.c.l.b16 %v370
    %v674 = vunpack.c.h.b16 %v370
    %v675 = vunpack.c.l.b16 %v371
    %v676 = vunpack.c.h.b16 %v371
    %v677 = vunpack.c.l.b16 %v372
    %v678 = vunpack.c.h.b16 %v372
    %v679 = vunpack.c.l.b16 %v373
    %v680 = vunpack.c.h.b16 %v373
    %v681 = vunpack.c.l.b16 %v374
    %v682 = vunpack.c.h.b16 %v374
    %v683 = vunpack.c.l.b16 %v375
    %v684 = vunpack.c.h.b16 %v375
    %v685 = vunpack.c.l.b16 %v376
    %v686 = vunpack.c.h.b16 %v376
    %v687 = vunpack.c.l.b16 %v377
    %v688 = vunpack.c.h.b16 %v377
    %v689 = vunpack.c.l.b16 %v378
    %v690 = vunpack.c.h.b16 %v378
    %v691 = vunpack.c.l.b16 %v379
    %v692 = vunpack.c.h.b16 %v379
    %v693 = vunpack.c.l.b16 %v380
    %v694 = vunpack.c.h.b16 %v380
    %v695 = vunpack.c.l.b16 %v381
    %v696 = vunpack.c.h.b16 %v381
    %v697 = vunpack.c.l.b16 %v382
    %v698 = vunpack.c.h.b16 %v382
    %v699 = vunpack.c.l.b16 %v383
    %v700 = vunpack.c.h.b16 %v383
    %v701 = vunpack.c.l.b16 %v384
    %v702 = vunpack.c.h.b16 %v384
    %v703 = vunpack.c.l.b16 %v385
    %v704 = vunpack.c.h.b16 %v385
    %v705 = vunpack.c.l.b16 %v386
    %v706 = vunpack.c.h.b16 %v386
    %v707 = vunpack.c.l.b16 %v387
    %v708 = vunpack.c.h.b16 %v387
    %v709 = vunpack.c.l.b16 %v388
    %v710 = vunpack.c.h.b16 %v388
    %v711 = vunpack.c.l.b16 %v389
    %v712 = vunpack.c.h.b16 %v389
    %v713 = vunpack.c.l.b16 %v390
    %v714 = vunpack.c.h.b16 %v390
    %v715 = vunpack.c.l.b16 %v391
    %v716 = vunpack.c.h.b16 %v391
    %v717 = vunpack.c.l.b16 %v392
    %v718 = vunpack.c.h.b16 %v392
    %v719 = vunpack.c.l.b16 %v393
    %v720 = vunpack.c.h.b16 %v393
    %v721 = vunpack.c.l.b16 %v394
    %v722 = vunpack.c.h.b16 %v394
    %v723 = vunpack.c.l.b16 %v395
    %v724 = vunpack.c.h.b16 %v395
    %v725 = vunpack.c.l.b16 %v396
    %v726 = vunpack.c.h.b16 %v396
    %v727 = vunpack.c.l.b16 %v397
    %v728 = vunpack.c.h.b16 %v397
    %v729 = vunpack.c.l.b16 %v398
    %v730 = vunpack.c.h.b16 %v398
    %v731 = vunpack.c.l.b16 %v399
    %v732 = vunpack.c.h.b16 %v399
    %v733 = vunpack.c.l.b16 %v400
    %v734 = vunpack.c.h.b16 %v400
    %v735 = vunpack.c.l.b16 %v401
    %v736 = vunpack.c.h.b16 %v401
    %v737 = vunpack.c.l.b16 %v402
    %v738 = vunpack.c.h.b16 %v402
    %v739 = vunpack.c.l.b16 %v403
    %v740 = vunpack.c.h.b16 %v403
    %v741 = vunpack.c.l.b16 %v404
    %v742 = vunpack.c.h.b16 %v404
    %v743 = vunpack.c.l.b16 %v405
    %v744 = vunpack.c.h.b16 %v405
    %v745 = vunpack.c.l.b16 %v406
    %v746 = vunpack.c.h.b16 %v406
    %v747 = vunpack.c.l.b16 %v407
    %v748 = vunpack.c.h.b16 %v407
    %v749 = vunpack.c.l.b16 %v408
    %v750 = vunpack.c.h.b16 %v408
    %v751 = vunpack.c.l.b16 %v409
    %v752 = vunpack.c.h.b16 %v409
    %v753 = vunpack.c.l.b16 %v410
    %v754 = vunpack.c.h.b16 %v410
    %v755 = vunpack.c.l.b16 %v411
    %v756 = vunpack.c.h.b16 %v411
    %v757 = vunpack.c.l.b16 %v412
    %v758 = vunpack.c.h.b16 %v412
    %v759 = vunpack.c.l.b16 %v413
    %v760 = vunpack.c.h.b16 %v413
    %v761 = vunpack.c.l.b16 %v414
    %v762 = vunpack.c.h.b16 %v414
    %v763 = vunpack.c.l.b16 %v415
    %v764 = vunpack.c.h.b16 %v415
    %v765 = vunpack.c.l.b16 %v416
    %v766 = vunpack.c.h.b16 %v416
    %v767 = vunpack.c.l.b16 %v417
    %v768 = vunpack.c.h.b16 %v417
    %v769 = vunpack.c.l.b16 %v418
    %v770 = vunpack.c.h.b16 %v418
    %v771 = vunpack.c.l.b16 %v419
    %v772 = vunpack.c.h.b16 %v419
    %v773 = vunpack.c.l.b16 %v420
    %v774 = vunpack.c.h.b16 %v420
    %v775 = vunpack.c.l.b16 %v421
    %v776 = vunpack.c.h.b16 %v421
    %v777 = vunpack.c.l.b16 %v422
    %v778 = vunpack.c.h.b16 %v422
    %v779 = vunpack.c.l.b16 %v423
    %v780 = vunpack.c.h.b16 %v423
    %v781 = vunpack.c.l.b16 %v424
    %v782 = vunpack.c.h.b16 %v424
    %v783 = vunpack.c.l.b16 %v425
    %v784 = vunpack.c.h.b16 %v425
    %v785 = vunpack.c.l.b16 %v426
    %v786 = vunpack.c.h.b16 %v426
    %v787 = vunpack.c.l.b16 %v427
    %v788 = vunpack.c.h.b16 %v427
    %v789 = vunpack.c.l.b16 %v428
    %v790 = vunpack.c.h.b16 %v428
    %v791 = vunpack.c.l.b16 %v429
    %v792 = vunpack.c.h.b16 %v429
    %v793 = vunpack.c.l.b16 %v430
    %v794 = vunpack.c.h.b16 %v430
    %v795 = vunpack.c.l.b16 %v431
    %v796 = vunpack.c.h.b16 %v431
    %v797 = vunpack.c.l.b16 %v432
    %v798 = vunpack.c.h.b16 %v432
    %v799 = vunpack.c.l.b16 %v433
    %v800 = vunpack.c.h.b16 %v433
    %v801 = vunpack.c.l.b16 %v434
    %v802 = vunpack.c.h.b16 %v434
    %v803 = vunpack.c.l.b16 %v435
    %v804 = vunpack.c.h.b16 %v435
    %v805 = vunpack.c.l.b16 %v436
    %v806 = vunpack.c.h.b16 %v436
    %v807 = vunpack.c.l.b16 %v437
    %v808 = vunpack.c.h.b16 %v437
    %v809 = vunpack.c.l.b16 %v438
    %v810 = vunpack.c.h.b16 %v438
    %v811 = vunpack.c.l.b16 %v439
    %v812 = vunpack.c.h.b16 %v439
    %v813 = vunpack.c.l.b16 %v440
    %v814 = vunpack.c.h.b16 %v440
    %v815 = vunpack.c.l.b16 %v441
    %v816 = vunpack.c.h.b16 %v441
    %v817 = vunpack.c.l.b16 %v442
    %v818 = vunpack.c.h.b16 %v442
    %v819 = vunpack.c.l.b16 %v443
    %v820 = vunpack.c.h.b16 %v443
    %v821 = vunpack.c.l.b16 %v444
    %v822 = vunpack.c.h.b16 %v444
    %v823 = vunpack.c.l.b16 %v445
    %v824 = vunpack.c.h.b16 %v445
    %v825 = vunpack.c.l.b16 %v446
    %v826 = vunpack.c.h.b16 %v446
    %v827 = vunpack.c.l.b16 %v447
    %v828 = vunpack.c.h.b16 %v447
    %v829 = vunpack.c.l.b16 %v448
    %v830 = vunpack.c.h.b16 %v448
    %v831 = vunpack.c.l.b16 %v449
    %v832 = vunpack.c.h.b16 %v449
    %v833 = vunpack.c.l.b16 %v450
    %v834 = vunpack.c.h.b16 %v450
    %v835 = vpack.c.b16 %v583, %v579
    %v836 = vpack.c.b16 %v584, %v580
    %v837 = vpack.c.b16 %v585, %v581
    %v838 = vpack.c.b16 %v586, %v582
    %v839 = vpack.c.b16 %v591, %v587
    %v840 = vpack.c.b16 %v592, %v588
    %v841 = vpack.c.b16 %v593, %v589
    %v842 = vpack.c.b16 %v594, %v590
    %v843 = vpack.c.b16 %v599, %v595
    %v844 = vpack.c.b16 %v600, %v596
    %v845 = vpack.c.b16 %v601, %v597
    %v846 = vpack.c.b16 %v602, %v598
    %v847 = vpack.c.b16 %v607, %v603
    %v848 = vpack.c.b16 %v608, %v604
    %v849 = vpack.c.b16 %v609, %v605
    %v850 = vpack.c.b16 %v610, %v606
    %v851 = vpack.c.b16 %v615, %v611
    %v852 = vpack.c.b16 %v616, %v612
    %v853 = vpack.c.b16 %v617, %v613
    %v854 = vpack.c.b16 %v618, %v614
    %v855 = vpack.c.b16 %v623, %v619
    %v856 = vpack.c.b16 %v624, %v620
    %v857 = vpack.c.b16 %v625, %v621
    %v858 = vpack.c.b16 %v626, %v622
    %v859 = vpack.c.b16 %v631, %v627
    %v860 = vpack.c.b16 %v632, %v628
    %v861 = vpack.c.b16 %v633, %v629
    %v862 = vpack.c.b16 %v634, %v630
    %v863 = vpack.c.b16 %v639, %v635
    %v864 = vpack.c.b16 %v640, %v636
    %v865 = vpack.c.b16 %v641, %v637
    %v866 = vpack.c.b16 %v642, %v638
    %v867 = vpack.c.b16 %v647, %v643
    %v868 = vpack.c.b16 %v648, %v644
    %v869 = vpack.c.b16 %v649, %v645
    %v870 = vpack.c.b16 %v650, %v646
    %v871 = vpack.c.b16 %v655, %v651
    %v872 = vpack.c.b16 %v656, %v652
    %v873 = vpack.c.b16 %v657, %v653
    %v874 = vpack.c.b16 %v658, %v654
    %v875 = vpack.c.b16 %v663, %v659
    %v876 = vpack.c.b16 %v664, %v660
    %v877 = vpack.c.b16 %v665, %v661
    %v878 = vpack.c.b16 %v666, %v662
    %v879 = vpack.c.b16 %v671, %v667
    %v880 = vpack.c.b16 %v672, %v668
    %v881 = vpack.c.b16 %v673, %v669
    %v882 = vpack.c.b16 %v674, %v670
    %v883 = vpack.c.b16 %v679, %v675
    %v884 = vpack.c.b16 %v680, %v676
    %v885 = vpack.c.b16 %v681, %v677
    %v886 = vpack.c.b16 %v682, %v678
    %v887 = vpack.c.b16 %v687, %v683
    %v888 = vpack.c.b16 %v688, %v684
    %v889 = vpack.c.b16 %v689, %v685
    %v890 = vpack.c.b16 %v690, %v686
    %v891 = vpack.c.b16 %v695, %v691
    %v892 = vpack.c.b16 %v696, %v692
    %v893 = vpack.c.b16 %v697, %v693
    %v894 = vpack.c.b16 %v698, %v694
    %v895 = vpack.c.b16 %v703, %v699
    %v896 = vpack.c.b16 %v704, %v700
    %v897 = vpack.c.b16 %v705, %v701
    %v898 = vpack.c.b16 %v706, %v702
    %v899 = vpack.c.b16 %v711, %v707
    %v900 = vpack.c.b16 %v712, %v708
    %v901 = vpack.c.b16 %v713, %v709
    %v902 = vpack.c.b16 %v714, %v710
    %v903 = vpack.c.b16 %v719, %v715
    %v904 = vpack.c.b16 %v720, %v716
    %v905 = vpack.c.b16 %v721, %v717
    %v906 = vpack.c.b16 %v722, %v718
    %v907 = vpack.c.b16 %v727, %v723
    %v908 = vpack.c.b16 %v728, %v724
    %v909 = vpack.c.b16 %v729, %v725
    %v910 = vpack.c.b16 %v730, %v726
    %v911 = vpack.c.b16 %v735, %v731
    %v912 = vpack.c.b16 %v736, %v732
    %v913 = vpack.c.b16 %v737, %v733
    %v914 = vpack.c.b16 %v738, %v734
    %v915 = vpack.c.b16 %v743, %v739
    %v916 = vpack.c.b16 %v744, %v740
    %v917 = vpack.c.b16 %v745, %v741
    %v918 = vpack.c.b16 %v746, %v742
    %v919 = vpack.c.b16 %v751, %v747
    %v920 = vpack.c.b16 %v752, %v748
    %v921 = vpack.c.b16 %v753, %v749
    %v922 = vpack.c.b16 %v754, %v750
    %v923 = vpack.c.b16 %v759, %v755
    %v924 = vpack.c.b16 %v760, %v756
    %v925 = vpack.c.b16 %v761, %v757
    %v926 = vpack.c.b16 %v762, %v758
    %v927 = vpack.c.b16 %v767, %v763
    %v928 = vpack.c.b16 %v768, %v764
    %v929 = vpack.c.b16 %v769, %v765
    %v930 = vpack.c.b16 %v770, %v766
    %v931 = vpack.c.b16 %v775, %v771
    %v932 = vpack.c.b16 %v776, %v772
    %v933 = vpack.c.b16 %v777, %v773
    %v934 = vpack.c.b16 %v778, %v774
    %v935 = vpack.c.b16 %v783, %v779
    %v936 = vpack.c.b16 %v784, %v780
    %v937 = vpack.c.b16 %v785, %v781
    %v938 = vpack.c.b16 %v786, %v782
    %v939 = vpack.c.b16 %v791, %v787
    %v940 = vpack.c.b16 %v792, %v788
    %v941 = vpack.c.b16 %v793, %v789
    %v942 = vpack.c.b16 %v794, %v790
    %v943 = vpack.c.b16 %v799, %v795
    %v944 = vpack.c.b16 %v800, %v796
    %v945 = vpack.c.b16 %v801, %v797
    %v946 = vpack.c.b16 %v802, %v798
    %v947 = vpack.c.b16 %v807, %v803
    %v948 = vpack.c.b16 %v808, %v804
    %v949 = vpack.c.b16 %v809, %v805
    %v950 = vpack.c.b16 %v810, %v806
    %v951 = vpack.c.b16 %v815, %v811
    %v952 = vpack.c.b16 %v816, %v812
    %v953 = vpack.c.b16 %v817, %v813
    %v954 = vpack.c.b16 %v818, %v814
    %v955 = vpack.c.b16 %v823, %v819
    %v956 = vpack.c.b16 %v824, %v820
    %v957 = vpack.c.b16 %v825, %v821
    %v958 = vpack.c.b16 %v826, %v822
    %v959 = vpack.c.b16 %v831, %v827
    %v960 = vpack.c.b16 %v832, %v828
    %v961 = vpack.c.b16 %v833, %v829
    %v962 = vpack.c.b16 %v834, %v830
    %1091 = vmatpush.bf16.msra.mxu0 %v863
    %1092 = vmatpush.bf16.msra.mxu0 %v859
    %1093 = vmatpush.bf16.msra.mxu0 %v855
    %1094 = vmatpush.bf16.msra.mxu0 %v851
    %1095 = vmatpush.bf16.msra.mxu0 %v847
    %1096 = vmatpush.bf16.msra.mxu0 %v843
    %1097 = vmatpush.bf16.msra.mxu0 %v839
    %1098 = vmatpush.bf16.msra.mxu0 %v835
    %1099 = vmatmul.bf16.gmra.mxu0 %v319
    %v1100 = vpop.f32.mrf.mxu0
    %v1101 = vadd.f32 0.0, %v1100
    %v1102 = vpop.f32.mrf.mxu0
    %1103 = vdwg.mxu0
    %1104 = vmatpush.bf16.msra.mxu0 %v895
    %1105 = vmatpush.bf16.msra.mxu0 %v891
    %1106 = vmatpush.bf16.msra.mxu0 %v887
    %1107 = vmatpush.bf16.msra.mxu0 %v883
    %1108 = vmatpush.bf16.msra.mxu0 %v879
    %1109 = vmatpush.bf16.msra.mxu0 %v875
    %1110 = vmatpush.bf16.msra.mxu0 %v871
    %1111 = vmatpush.bf16.msra.mxu0 %v867
    %1112 = vmatmul.bf16.gmra.mxu0 %v320
    %v1113 = vpop.f32.mrf.mxu0
    %v1114 = vadd.f32 %v1101, %v1113
    %v1115 = vpop.f32.mrf.mxu0
    %1116 = vdwg.mxu0
    %1117 = vmatpush.bf16.msra.mxu0 %v927
    %1118 = vmatpush.bf16.msra.mxu0 %v923
    %1119 = vmatpush.bf16.msra.mxu0 %v919
    %1120 = vmatpush.bf16.msra.mxu0 %v915
    %1121 = vmatpush.bf16.msra.mxu0 %v911
    %1122 = vmatpush.bf16.msra.mxu0 %v907
    %1123 = vmatpush.bf16.msra.mxu0 %v903
    %1124 = vmatpush.bf16.msra.mxu0 %v899
    %1125 = vmatmul.bf16.gmra.mxu0 %v321
    %v1126 = vpop.f32.mrf.mxu0
    %v1127 = vadd.f32 %v1114, %v1126
    %v1128 = vpop.f32.mrf.mxu0
    %1129 = vdwg.mxu0
    %1130 = vmatpush.bf16.msra.mxu0 %v959
    %1131 = vmatpush.bf16.msra.mxu0 %v955
    %1132 = vmatpush.bf16.msra.mxu0 %v951
    %1133 = vmatpush.bf16.msra.mxu0 %v947
    %1134 = vmatpush.bf16.msra.mxu0 %v943
    %1135 = vmatpush.bf16.msra.mxu0 %v939
    %1136 = vmatpush.bf16.msra.mxu0 %v935
    %1137 = vmatpush.bf16.msra.mxu0 %v931
    %1138 = vmatmul.bf16.gmra.mxu0 %v322
    %v1139 = vpop.f32.mrf.mxu0
    %v1140 = vadd.f32 %v1127, %v1139
    %v1141 = vpop.f32.mrf.mxu0
    %1142 = vdwg.mxu0
    %1143 = vmatpush.bf16.msra.mxu0 %v864
    %1144 = vmatpush.bf16.msra.mxu0 %v860
    %1145 = vmatpush.bf16.msra.mxu0 %v856
    %1146 = vmatpush.bf16.msra.mxu0 %v852
    %1147 = vmatpush.bf16.msra.mxu0 %v848
    %1148 = vmatpush.bf16.msra.mxu0 %v844
    %1149 = vmatpush.bf16.msra.mxu0 %v840
    %1150 = vmatpush.bf16.msra.mxu0 %v836
    %1151 = vmatmul.bf16.gmra.mxu0 %v319
    %v1152 = vpop.f32.mrf.mxu0
    %v1153 = vadd.f32 0.0, %v1152
    %v1154 = vpop.f32.mrf.mxu0
    %1155 = vdwg.mxu0
    %1156 = vmatpush.bf16.msra.mxu0 %v896
    %1157 = vmatpush.bf16.msra.mxu0 %v892
    %1158 = vmatpush.bf16.msra.mxu0 %v888
    %1159 = vmatpush.bf16.msra.mxu0 %v884
    %1160 = vmatpush.bf16.msra.mxu0 %v880
    %1161 = vmatpush.bf16.msra.mxu0 %v876
    %1162 = vmatpush.bf16.msra.mxu0 %v872
    %1163 = vmatpush.bf16.msra.mxu0 %v868
    %1164 = vmatmul.bf16.gmra.mxu0 %v320
    %v1165 = vpop.f32.mrf.mxu0
    %v1166 = vadd.f32 %v1153, %v1165
    %v1167 = vpop.f32.mrf.mxu0
    %1168 = vdwg.mxu0
    %1169 = vmatpush.bf16.msra.mxu0 %v928
    %1170 = vmatpush.bf16.msra.mxu0 %v924
    %1171 = vmatpush.bf16.msra.mxu0 %v920
    %1172 = vmatpush.bf16.msra.mxu0 %v916
    %1173 = vmatpush.bf16.msra.mxu0 %v912
    %1174 = vmatpush.bf16.msra.mxu0 %v908
    %1175 = vmatpush.bf16.msra.mxu0 %v904
    %1176 = vmatpush.bf16.msra.mxu0 %v900
    %1177 = vmatmul.bf16.gmra.mxu0 %v321
    %v1178 = vpop.f32.mrf.mxu0
    %v1179 = vadd.f32 %v1166, %v1178
    %v1180 = vpop.f32.mrf.mxu0
    %1181 = vdwg.mxu0
    %1182 = vmatpush.bf16.msra.mxu0 %v960
    %1183 = vmatpush.bf16.msra.mxu0 %v956
    %1184 = vmatpush.bf16.msra.mxu0 %v952
    %1185 = vmatpush.bf16.msra.mxu0 %v948
    %1186 = vmatpush.bf16.msra.mxu0 %v944
    %1187 = vmatpush.bf16.msra.mxu0 %v940
    %1188 = vmatpush.bf16.msra.mxu0 %v936
    %1189 = vmatpush.bf16.msra.mxu0 %v932
    %1190 = vmatmul.bf16.gmra.mxu0 %v322
    %v1191 = vpop.f32.mrf.mxu0
    %v1192 = vadd.f32 %v1179, %v1191
    %v1193 = vpop.f32.mrf.mxu0
    %1194 = vdwg.mxu0
    %1195 = vmatpush.bf16.msra.mxu0 %v865
    %1196 = vmatpush.bf16.msra.mxu0 %v861
    %1197 = vmatpush.bf16.msra.mxu0 %v857
    %1198 = vmatpush.bf16.msra.mxu0 %v853
    %1199 = vmatpush.bf16.msra.mxu0 %v849
    %1200 = vmatpush.bf16.msra.mxu0 %v845
    %1201 = vmatpush.bf16.msra.mxu0 %v841
    %1202 = vmatpush.bf16.msra.mxu0 %v837
    %1203 = vmatmul.bf16.gmra.mxu0 %v319
    %v1204 = vpop.f32.mrf.mxu0
    %v1205 = vadd.f32 0.0, %v1204
    %v1206 = vpop.f32.mrf.mxu0
    %1207 = vdwg.mxu0
    %1208 = vmatpush.bf16.msra.mxu0 %v897
    %1209 = vmatpush.bf16.msra.mxu0 %v893
    %1210 = vmatpush.bf16.msra.mxu0 %v889
    %1211 = vmatpush.bf16.msra.mxu0 %v885
    %1212 = vmatpush.bf16.msra.mxu0 %v881
    %1213 = vmatpush.bf16.msra.mxu0 %v877
    %1214 = vmatpush.bf16.msra.mxu0 %v873
    %1215 = vmatpush.bf16.msra.mxu0 %v869
    %1216 = vmatmul.bf16.gmra.mxu0 %v320
    %v1217 = vpop.f32.mrf.mxu0
    %v1218 = vadd.f32 %v1205, %v1217
    %v1219 = vpop.f32.mrf.mxu0
    %1220 = vdwg.mxu0
    %1221 = vmatpush.bf16.msra.mxu0 %v929
    %1222 = vmatpush.bf16.msra.mxu0 %v925
    %1223 = vmatpush.bf16.msra.mxu0 %v921
    %1224 = vmatpush.bf16.msra.mxu0 %v917
    %1225 = vmatpush.bf16.msra.mxu0 %v913
    %1226 = vmatpush.bf16.msra.mxu0 %v909
    %1227 = vmatpush.bf16.msra.mxu0 %v905
    %1228 = vmatpush.bf16.msra.mxu0 %v901
    %1229 = vmatmul.bf16.gmra.mxu0 %v321
    %v1230 = vpop.f32.mrf.mxu0
    %v1231 = vadd.f32 %v1218, %v1230
    %v1232 = vpop.f32.mrf.mxu0
    %1233 = vdwg.mxu0
    %1234 = vmatpush.bf16.msra.mxu0 %v961
    %1235 = vmatpush.bf16.msra.mxu0 %v957
    %1236 = vmatpush.bf16.msra.mxu0 %v953
    %1237 = vmatpush.bf16.msra.mxu0 %v949
    %1238 = vmatpush.bf16.msra.mxu0 %v945
    %1239 = vmatpush.bf16.msra.mxu0 %v941
    %1240 = vmatpush.bf16.msra.mxu0 %v937
    %1241 = vmatpush.bf16.msra.mxu0 %v933
    %1242 = vmatmul.bf16.gmra.mxu0 %v322
    %v1243 = vpop.f32.mrf.mxu0
    %v1244 = vadd.f32 %v1231, %v1243
    %v1245 = vpop.f32.mrf.mxu0
    %1246 = vdwg.mxu0
    %1247 = vmatpush.bf16.msra.mxu0 %v866
    %1248 = vmatpush.bf16.msra.mxu0 %v862
    %1249 = vmatpush.bf16.msra.mxu0 %v858
    %1250 = vmatpush.bf16.msra.mxu0 %v854
    %1251 = vmatpush.bf16.msra.mxu0 %v850
    %1252 = vmatpush.bf16.msra.mxu0 %v846
    %1253 = vmatpush.bf16.msra.mxu0 %v842
    %1254 = vmatpush.bf16.msra.mxu0 %v838
    %1255 = vmatmul.bf16.gmra.mxu0 %v319
    %v1256 = vpop.f32.mrf.mxu0
    %v1257 = vadd.f32 0.0, %v1256
    %v1258 = vpop.f32.mrf.mxu0
    %1259 = vdwg.mxu0
    %1260 = vmatpush.bf16.msra.mxu0 %v898
    %1261 = vmatpush.bf16.msra.mxu0 %v894
    %1262 = vmatpush.bf16.msra.mxu0 %v890
    %1263 = vmatpush.bf16.msra.mxu0 %v886
    %1264 = vmatpush.bf16.msra.mxu0 %v882
    %1265 = vmatpush.bf16.msra.mxu0 %v878
    %1266 = vmatpush.bf16.msra.mxu0 %v874
    %1267 = vmatpush.bf16.msra.mxu0 %v870
    %1268 = vmatmul.bf16.gmra.mxu0 %v320
    %v1269 = vpop.f32.mrf.mxu0
    %v1270 = vadd.f32 %v1257, %v1269
    %v1271 = vpop.f32.mrf.mxu0
    %1272 = vdwg.mxu0
    %1273 = vmatpush.bf16.msra.mxu0 %v930
    %1274 = vmatpush.bf16.msra.mxu0 %v926
    %1275 = vmatpush.bf16.msra.mxu0 %v922
    %1276 = vmatpush.bf16.msra.mxu0 %v918
    %1277 = vmatpush.bf16.msra.mxu0 %v914
    %1278 = vmatpush.bf16.msra.mxu0 %v910
    %1279 = vmatpush.bf16.msra.mxu0 %v906
    %1280 = vmatpush.bf16.msra.mxu0 %v902
    %1281 = vmatmul.bf16.gmra.mxu0 %v321
    %v1282 = vpop.f32.mrf.mxu0
    %v1283 = vadd.f32 %v1270, %v1282
    %v1284 = vpop.f32.mrf.mxu0
    %1285 = vdwg.mxu0
    %1286 = vmatpush.bf16.msra.mxu0 %v962
    %1287 = vmatpush.bf16.msra.mxu0 %v958
    %1288 = vmatpush.bf16.msra.mxu0 %v954
    %1289 = vmatpush.bf16.msra.mxu0 %v950
    %1290 = vmatpush.bf16.msra.mxu0 %v946
    %1291 = vmatpush.bf16.msra.mxu0 %v942
    %1292 = vmatpush.bf16.msra.mxu0 %v938
    %1293 = vmatpush.bf16.msra.mxu0 %v934
    %1294 = vmatmul.bf16.gmra.mxu0 %v322
    %v1295 = vpop.f32.mrf.mxu0
    %v1296 = vadd.f32 %v1283, %v1295
    %v1297 = vpop.f32.mrf.mxu0
    %1298 = vdwg.mxu0
    %v1299 = vld [vmem:[%s6] sm:$0xf]
    %v1300 = vld [vmem:[#allocation9] sm:$0xf]
    %v1301 = vrot.slane %v1140, 4
    %v1302 = vadd.f32 %v1140, %v1301
    %v1303 = vrot.slane %v1302, 2
    %v1304 = vadd.f32 %v1302, %v1303
    %v1305 = vrot.slane %v1304, 1
    %v1306 = vadd.f32 %v1304, %v1305
    %v1307 = vrot.slane %v1192, 4
    %v1308 = vadd.f32 %v1192, %v1307
    %v1309 = vrot.slane %v1308, 2
    %v1310 = vadd.f32 %v1308, %v1309
    %v1311 = vrot.slane %v1310, 1
    %v1312 = vadd.f32 %v1310, %v1311
    %v1313 = vrot.slane %v1244, 4
    %v1314 = vadd.f32 %v1244, %v1313
    %v1315 = vrot.slane %v1314, 2
    %v1316 = vadd.f32 %v1314, %v1315
    %v1317 = vrot.slane %v1316, 1
    %v1318 = vadd.f32 %v1316, %v1317
    %v1319 = vrot.slane %v1296, 4
    %v1320 = vadd.f32 %v1296, %v1319
    %v1321 = vrot.slane %v1320, 2
    %v1322 = vadd.f32 %v1320, %v1321
    %v1323 = vrot.slane %v1322, 1
    %v1324 = vadd.f32 %v1322, %v1323
    %v1325 = vmul.f32 %v1306, %v189
    %v1326 = vmul.f32 %v1312, %v189
    %v1327 = vmul.f32 %v1318, %v189
    %v1328 = vmul.f32 %v1324, %v189
    %v1329 = vmul.f32 %v1140, %v1140
    %v1330 = vmul.f32 %v1192, %v1192
    %v1331 = vmul.f32 %v1244, %v1244
    %v1332 = vmul.f32 %v1296, %v1296
    %v1333 = vrot.slane %v1329, 4
    %v1334 = vadd.f32 %v1329, %v1333
    %v1335 = vrot.slane %v1334, 2
    %v1336 = vadd.f32 %v1334, %v1335
    %v1337 = vrot.slane %v1336, 1
    %v1338 = vadd.f32 %v1336, %v1337
    %v1339 = vrot.slane %v1330, 4
    %v1340 = vadd.f32 %v1330, %v1339
    %v1341 = vrot.slane %v1340, 2
    %v1342 = vadd.f32 %v1340, %v1341
    %v1343 = vrot.slane %v1342, 1
    %v1344 = vadd.f32 %v1342, %v1343
    %v1345 = vrot.slane %v1331, 4
    %v1346 = vadd.f32 %v1331, %v1345
    %v1347 = vrot.slane %v1346, 2
    %v1348 = vadd.f32 %v1346, %v1347
    %v1349 = vrot.slane %v1348, 1
    %v1350 = vadd.f32 %v1348, %v1349
    %v1351 = vrot.slane %v1332, 4
    %v1352 = vadd.f32 %v1332, %v1351
    %v1353 = vrot.slane %v1352, 2
    %v1354 = vadd.f32 %v1352, %v1353
    %v1355 = vrot.slane %v1354, 1
    %v1356 = vadd.f32 %v1354, %v1355
    %v1357 = vmul.f32 %v1338, %v189
    %v1358 = vmul.f32 %v1344, %v189
    %v1359 = vmul.f32 %v1350, %v189
    %v1360 = vmul.f32 %v1356, %v189
    %v1361 = vmul.f32 %v1325, %v1325
    %v1362 = vmul.f32 %v1326, %v1326
    %v1363 = vmul.f32 %v1327, %v1327
    %v1364 = vmul.f32 %v1328, %v1328
    %v1365 = vsub.f32 %v1357, %v1361
    %v1366 = vsub.f32 %v1358, %v1362
    %v1367 = vsub.f32 %v1359, %v1363
    %v1368 = vsub.f32 %v1360, %v1364
    %v1369 = vmax.f32 %v1365, 0.0
    %v1370 = vmax.f32 %v1366, 0.0
    %v1371 = vmax.f32 %v1367, 0.0
    %v1372 = vmax.f32 %v1368, 0.0
    %v1373 = vadd.f32 %v1369, 1e-05
    %v1374 = vadd.f32 %v1370, 1e-05
    %v1375 = vadd.f32 %v1371, 1e-05
    %v1376 = vadd.f32 %v1372, 1e-05
    %v1377 = vrsqrt.pop %v1373
    %v1378 = vmul.f32 %v1377, %v1373
    %v1379 = vmul.f32 %v1378, %v1377
    %v1380 = vmul.f32 0.5, %v1379
    %v1381 = vsub.f32 1.5, %v1380
    %v1382 = vmul.f32 %v1377, %v1381
    %vm1383 = vweird.f32 %v1373
    %vm1384 = vweird.f32 %v1377
    %vm1385 = vmor %vm1383, %vm1384
    %v1386 = vsel %vm1385, %v1377, %v1382
    %v1387 = vrsqrt.pop %v1374
    %v1388 = vmul.f32 %v1387, %v1374
    %v1389 = vmul.f32 %v1388, %v1387
    %v1390 = vmul.f32 0.5, %v1389
    %v1391 = vsub.f32 1.5, %v1390
    %v1392 = vmul.f32 %v1387, %v1391
    %vm1393 = vweird.f32 %v1374
    %vm1394 = vweird.f32 %v1387
    %vm1395 = vmor %vm1393, %vm1394
    %v1396 = vsel %vm1395, %v1387, %v1392
    %v1397 = vrsqrt.pop %v1375
    %v1398 = vmul.f32 %v1397, %v1375
    %v1399 = vmul.f32 %v1398, %v1397
    %v1400 = vmul.f32 0.5, %v1399
    %v1401 = vsub.f32 1.5, %v1400
    %v1402 = vmul.f32 %v1397, %v1401
    %vm1403 = vweird.f32 %v1375
    %vm1404 = vweird.f32 %v1397
    %vm1405 = vmor %vm1403, %vm1404
    %v1406 = vsel %vm1405, %v1397, %v1402
    %v1407 = vrsqrt.pop %v1376
    %v1408 = vmul.f32 %v1407, %v1376
    %v1409 = vmul.f32 %v1408, %v1407
    %v1410 = vmul.f32 0.5, %v1409
    %v1411 = vsub.f32 1.5, %v1410
    %v1412 = vmul.f32 %v1407, %v1411
    %vm1413 = vweird.f32 %v1376
    %vm1414 = vweird.f32 %v1407
    %vm1415 = vmor %vm1413, %vm1414
    %v1416 = vsel %vm1415, %v1407, %v1412
    %v1421 = vrot.slane %v1396, 7
    %v1422 = vrot.slane %v1406, 6
    %v1423 = vrot.slane %v1416, 5
    %vm1424 = vcmask 1040384
    %v1425 = vsel %vm1424, %v1386, %v1421
    %vm1426 = vcmask 1042434
    %v1427 = vsel %vm1426, %v1422, %v1423
    %vm1428 = vcmask 1041408
    %v1429 = vsel %vm1428, %v1425, %v1427
    %v1431 = vmul.f32 %v1299, %v1429
    %v1433 = vperm.slane %v1431, 0
    %v1434 = vperm.slane %v1431, 1
    %v1435 = vperm.slane %v1431, 2
    %v1436 = vperm.slane %v1431, 3
    %v1441 = vmul.f32 %v1325, %v1433
    %v1442 = vmul.f32 %v1326, %v1434
    %v1443 = vmul.f32 %v1327, %v1435
    %v1444 = vmul.f32 %v1328, %v1436
    %v1449 = vrot.slane %v1442, 7
    %v1450 = vrot.slane %v1443, 6
    %v1451 = vrot.slane %v1444, 5
    %v1452 = vsel %vm1424, %v1441, %v1449
    %v1453 = vsel %vm1426, %v1450, %v1451
    %v1454 = vsel %vm1428, %v1452, %v1453
    %v1456 = vsub.f32 %v1300, %v1454
    %v1457 = vmul.f32 %v1140, %v1433
    %v1458 = vmul.f32 %v1192, %v1434
    %v1459 = vmul.f32 %v1244, %v1435
    %v1460 = vmul.f32 %v1296, %v1436
    %v1462 = vperm.slane %v1456, 0
    %v1463 = vperm.slane %v1456, 1
    %v1464 = vperm.slane %v1456, 2
    %v1465 = vperm.slane %v1456, 3
    %v1470 = vadd.f32 %v1457, %v1462
    %v1471 = vadd.f32 %v1458, %v1463
    %v1472 = vadd.f32 %v1459, %v1464
    %v1473 = vadd.f32 %v1460, %v1465
    %v1474 = vmax.f32 %v1470, 0.0
    %v1475 = vmax.f32 %v1471, 0.0
    %v1476 = vmax.f32 %v1472, 0.0
    %v1477 = vmax.f32 %v1473, 0.0
    %v1478 = vpack.c.bf16 %v1474, %v1474
    %v1479 = vpack.c.bf16 %v1475, %v1475
    %v1480 = vpack.c.bf16 %v1476, %v1476
    %v1481 = vpack.c.bf16 %v1477, %v1477
    %v1482 = vld [vmem:[#allocation10] sm:$0xf]
    %v1483 = vld [vmem:[#allocation10 + $0x4] sm:$0xf]
    %v1484 = vld [vmem:[#allocation10 + $0x8] sm:$0xf]
    %v1485 = vld [vmem:[#allocation10 + $0xc] sm:$0xf]
    %v1486 = vld [vmem:[#allocation10 + $0x10] sm:$0xf]
    %v1487 = vld [vmem:[#allocation10 + $0x14] sm:$0xf]
    %v1488 = vld [vmem:[#allocation10 + $0x18] sm:$0xf]
    %v1489 = vld [vmem:[#allocation10 + $0x1c] sm:$0xf]
    %v1490 = vld [vmem:[#allocation10 + $0x20] sm:$0xf]
    %v1491 = vld [vmem:[#allocation10 + $0x24] sm:$0xf]
    %v1492 = vld [vmem:[#allocation10 + $0x28] sm:$0xf]
    %v1493 = vld [vmem:[#allocation10 + $0x2c] sm:$0xf]
    %v1494 = vld [vmem:[#allocation10 + $0x30] sm:$0xf]
    %v1495 = vld [vmem:[#allocation10 + $0x34] sm:$0xf]
    %v1496 = vld [vmem:[#allocation10 + $0x38] sm:$0xf]
    %v1497 = vld [vmem:[#allocation10 + $0x3c] sm:$0xf]
    %v1498 = vld [vmem:[#allocation10 + $0x40] sm:$0xf]
    %v1499 = vld [vmem:[#allocation10 + $0x44] sm:$0xf]
    %v1500 = vld [vmem:[#allocation10 + $0x48] sm:$0xf]
    %v1501 = vld [vmem:[#allocation10 + $0x4c] sm:$0xf]
    %v1502 = vld [vmem:[#allocation10 + $0x50] sm:$0xf]
    %v1503 = vld [vmem:[#allocation10 + $0x54] sm:$0xf]
    %v1504 = vld [vmem:[#allocation10 + $0x58] sm:$0xf]
    %v1505 = vld [vmem:[#allocation10 + $0x5c] sm:$0xf]
    %v1506 = vld [vmem:[#allocation10 + $0x60] sm:$0xf]
    %v1507 = vld [vmem:[#allocation10 + $0x64] sm:$0xf]
    %v1508 = vld [vmem:[#allocation10 + $0x68] sm:$0xf]
    %v1509 = vld [vmem:[#allocation10 + $0x6c] sm:$0xf]
    %v1510 = vld [vmem:[#allocation10 + $0x70] sm:$0xf]
    %v1511 = vld [vmem:[#allocation10 + $0x74] sm:$0xf]
    %v1512 = vld [vmem:[#allocation10 + $0x78] sm:$0xf]
    %v1513 = vld [vmem:[#allocation10 + $0x7c] sm:$0xf]
    %v1514 = vld [vmem:[#allocation10 + $0x80] sm:$0xf]
    %v1515 = vld [vmem:[#allocation10 + $0x84] sm:$0xf]
    %v1516 = vld [vmem:[#allocation10 + $0x88] sm:$0xf]
    %v1517 = vld [vmem:[#allocation10 + $0x8c] sm:$0xf]
    %v1518 = vld [vmem:[#allocation10 + $0x90] sm:$0xf]
    %v1519 = vld [vmem:[#allocation10 + $0x94] sm:$0xf]
    %v1520 = vld [vmem:[#allocation10 + $0x98] sm:$0xf]
    %v1521 = vld [vmem:[#allocation10 + $0x9c] sm:$0xf]
    %v1522 = vld [vmem:[#allocation10 + $0xa0] sm:$0xf]
    %v1523 = vld [vmem:[#allocation10 + $0xa4] sm:$0xf]
    %v1524 = vld [vmem:[#allocation10 + $0xa8] sm:$0xf]
    %v1525 = vld [vmem:[#allocation10 + $0xac] sm:$0xf]
    %v1526 = vld [vmem:[#allocation10 + $0xb0] sm:$0xf]
    %v1527 = vld [vmem:[#allocation10 + $0xb4] sm:$0xf]
    %v1528 = vld [vmem:[#allocation10 + $0xb8] sm:$0xf]
    %v1529 = vld [vmem:[#allocation10 + $0xbc] sm:$0xf]
    %v1530 = vld [vmem:[#allocation10 + $0xc0] sm:$0xf]
    %v1531 = vld [vmem:[#allocation10 + $0xc4] sm:$0xf]
    %v1532 = vld [vmem:[#allocation10 + $0xc8] sm:$0xf]
    %v1533 = vld [vmem:[#allocation10 + $0xcc] sm:$0xf]
    %v1534 = vld [vmem:[#allocation10 + $0xd0] sm:$0xf]
    %v1535 = vld [vmem:[#allocation10 + $0xd4] sm:$0xf]
    %v1536 = vld [vmem:[#allocation10 + $0xd8] sm:$0xf]
    %v1537 = vld [vmem:[#allocation10 + $0xdc] sm:$0xf]
    %v1538 = vld [vmem:[#allocation10 + $0xe0] sm:$0xf]
    %v1539 = vld [vmem:[#allocation10 + $0xe4] sm:$0xf]
    %v1540 = vld [vmem:[#allocation10 + $0xe8] sm:$0xf]
    %v1541 = vld [vmem:[#allocation10 + $0xec] sm:$0xf]
    %v1542 = vld [vmem:[#allocation10 + $0xf0] sm:$0xf]
    %v1543 = vld [vmem:[#allocation10 + $0xf4] sm:$0xf]
    %v1544 = vld [vmem:[#allocation10 + $0xf8] sm:$0xf]
    %v1545 = vld [vmem:[#allocation10 + $0xfc] sm:$0xf]
    %v1546 = vld [vmem:[#allocation12] sm:$0x1]
    %v1548 = vperm.slane %v1546, 0
    %v1614 = vunpack.c.l.b16 %v1482
    %v1615 = vunpack.c.l.b16 %v1483
    %v1616 = vunpack.c.l.b16 %v1484
    %v1617 = vunpack.c.l.b16 %v1485
    %v1618 = vunpack.c.l.b16 %v1486
    %v1619 = vunpack.c.l.b16 %v1487
    %v1620 = vunpack.c.l.b16 %v1488
    %v1621 = vunpack.c.l.b16 %v1489
    %v1622 = vunpack.c.l.b16 %v1490
    %v1623 = vunpack.c.l.b16 %v1491
    %v1624 = vunpack.c.l.b16 %v1492
    %v1625 = vunpack.c.l.b16 %v1493
    %v1626 = vunpack.c.l.b16 %v1494
    %v1627 = vunpack.c.l.b16 %v1495
    %v1628 = vunpack.c.l.b16 %v1496
    %v1629 = vunpack.c.l.b16 %v1497
    %v1630 = vunpack.c.l.b16 %v1498
    %v1631 = vunpack.c.l.b16 %v1499
    %v1632 = vunpack.c.l.b16 %v1500
    %v1633 = vunpack.c.l.b16 %v1501
    %v1634 = vunpack.c.l.b16 %v1502
    %v1635 = vunpack.c.l.b16 %v1503
    %v1636 = vunpack.c.l.b16 %v1504
    %v1637 = vunpack.c.l.b16 %v1505
    %v1638 = vunpack.c.l.b16 %v1506
    %v1639 = vunpack.c.l.b16 %v1507
    %v1640 = vunpack.c.l.b16 %v1508
    %v1641 = vunpack.c.l.b16 %v1509
    %v1642 = vunpack.c.l.b16 %v1510
    %v1643 = vunpack.c.l.b16 %v1511
    %v1644 = vunpack.c.l.b16 %v1512
    %v1645 = vunpack.c.l.b16 %v1513
    %v1646 = vunpack.c.l.b16 %v1514
    %v1647 = vunpack.c.l.b16 %v1515
    %v1648 = vunpack.c.l.b16 %v1516
    %v1649 = vunpack.c.l.b16 %v1517
    %v1650 = vunpack.c.l.b16 %v1518
    %v1651 = vunpack.c.l.b16 %v1519
    %v1652 = vunpack.c.l.b16 %v1520
    %v1653 = vunpack.c.l.b16 %v1521
    %v1654 = vunpack.c.l.b16 %v1522
    %v1655 = vunpack.c.l.b16 %v1523
    %v1656 = vunpack.c.l.b16 %v1524
    %v1657 = vunpack.c.l.b16 %v1525
    %v1658 = vunpack.c.l.b16 %v1526
    %v1659 = vunpack.c.l.b16 %v1527
    %v1660 = vunpack.c.l.b16 %v1528
    %v1661 = vunpack.c.l.b16 %v1529
    %v1662 = vunpack.c.l.b16 %v1530
    %v1663 = vunpack.c.l.b16 %v1531
    %v1664 = vunpack.c.l.b16 %v1532
    %v1665 = vunpack.c.l.b16 %v1533
    %v1666 = vunpack.c.l.b16 %v1534
    %v1667 = vunpack.c.l.b16 %v1535
    %v1668 = vunpack.c.l.b16 %v1536
    %v1669 = vunpack.c.l.b16 %v1537
    %v1670 = vunpack.c.l.b16 %v1538
    %v1671 = vunpack.c.l.b16 %v1539
    %v1672 = vunpack.c.l.b16 %v1540
    %v1673 = vunpack.c.l.b16 %v1541
    %v1674 = vunpack.c.l.b16 %v1542
    %v1675 = vunpack.c.l.b16 %v1543
    %v1676 = vunpack.c.l.b16 %v1544
    %v1677 = vunpack.c.l.b16 %v1545
    %v1678 = vpack.c.b16 %v1615, %v1614
    %v1679 = vpack.c.b16 %v1617, %v1616
    %v1680 = vpack.c.b16 %v1619, %v1618
    %v1681 = vpack.c.b16 %v1621, %v1620
    %v1682 = vpack.c.b16 %v1623, %v1622
    %v1683 = vpack.c.b16 %v1625, %v1624
    %v1684 = vpack.c.b16 %v1627, %v1626
    %v1685 = vpack.c.b16 %v1629, %v1628
    %v1686 = vpack.c.b16 %v1631, %v1630
    %v1687 = vpack.c.b16 %v1633, %v1632
    %v1688 = vpack.c.b16 %v1635, %v1634
    %v1689 = vpack.c.b16 %v1637, %v1636
    %v1690 = vpack.c.b16 %v1639, %v1638
    %v1691 = vpack.c.b16 %v1641, %v1640
    %v1692 = vpack.c.b16 %v1643, %v1642
    %v1693 = vpack.c.b16 %v1645, %v1644
    %v1694 = vpack.c.b16 %v1647, %v1646
    %v1695 = vpack.c.b16 %v1649, %v1648
    %v1696 = vpack.c.b16 %v1651, %v1650
    %v1697 = vpack.c.b16 %v1653, %v1652
    %v1698 = vpack.c.b16 %v1655, %v1654
    %v1699 = vpack.c.b16 %v1657, %v1656
    %v1700 = vpack.c.b16 %v1659, %v1658
    %v1701 = vpack.c.b16 %v1661, %v1660
    %v1702 = vpack.c.b16 %v1663, %v1662
    %v1703 = vpack.c.b16 %v1665, %v1664
    %v1704 = vpack.c.b16 %v1667, %v1666
    %v1705 = vpack.c.b16 %v1669, %v1668
    %v1706 = vpack.c.b16 %v1671, %v1670
    %v1707 = vpack.c.b16 %v1673, %v1672
    %v1708 = vpack.c.b16 %v1675, %v1674
    %v1709 = vpack.c.b16 %v1677, %v1676
    %1742 = vmatpush.bf16.msra.mxu0 %v1685
    %1743 = vmatpush.bf16.msra.mxu0 %v1684
    %1744 = vmatpush.bf16.msra.mxu0 %v1683
    %1745 = vmatpush.bf16.msra.mxu0 %v1682
    %1746 = vmatpush.bf16.msra.mxu0 %v1681
    %1747 = vmatpush.bf16.msra.mxu0 %v1680
    %1748 = vmatpush.bf16.msra.mxu0 %v1679
    %1749 = vmatpush.bf16.msra.mxu0 %v1678
    %1750 = vmatmul.bf16.gmra.mxu0 %v1478
    %v1751 = vpop.f32.mrf.mxu0
    %v1752 = vadd.f32 %v1548, %v1751
    %v1753 = vpop.f32.mrf.mxu0
    %1754 = vdwg.mxu0
    %1755 = vmatpush.bf16.msra.mxu0 %v1693
    %1756 = vmatpush.bf16.msra.mxu0 %v1692
    %1757 = vmatpush.bf16.msra.mxu0 %v1691
    %1758 = vmatpush.bf16.msra.mxu0 %v1690
    %1759 = vmatpush.bf16.msra.mxu0 %v1689
    %1760 = vmatpush.bf16.msra.mxu0 %v1688
    %1761 = vmatpush.bf16.msra.mxu0 %v1687
    %1762 = vmatpush.bf16.msra.mxu0 %v1686
    %1763 = vmatmul.bf16.gmra.mxu0 %v1479
    %v1764 = vpop.f32.mrf.mxu0
    %v1765 = vadd.f32 %v1752, %v1764
    %v1766 = vpop.f32.mrf.mxu0
    %1767 = vdwg.mxu0
    %1768 = vmatpush.bf16.msra.mxu0 %v1701
    %1769 = vmatpush.bf16.msra.mxu0 %v1700
    %1770 = vmatpush.bf16.msra.mxu0 %v1699
    %1771 = vmatpush.bf16.msra.mxu0 %v1698
    %1772 = vmatpush.bf16.msra.mxu0 %v1697
    %1773 = vmatpush.bf16.msra.mxu0 %v1696
    %1774 = vmatpush.bf16.msra.mxu0 %v1695
    %1775 = vmatpush.bf16.msra.mxu0 %v1694
    %1776 = vmatmul.bf16.gmra.mxu0 %v1480
    %v1777 = vpop.f32.mrf.mxu0
    %v1778 = vadd.f32 %v1765, %v1777
    %v1779 = vpop.f32.mrf.mxu0
    %1780 = vdwg.mxu0
    %1781 = vmatpush.bf16.msra.mxu0 %v1709
    %1782 = vmatpush.bf16.msra.mxu0 %v1708
    %1783 = vmatpush.bf16.msra.mxu0 %v1707
    %1784 = vmatpush.bf16.msra.mxu0 %v1706
    %1785 = vmatpush.bf16.msra.mxu0 %v1705
    %1786 = vmatpush.bf16.msra.mxu0 %v1704
    %1787 = vmatpush.bf16.msra.mxu0 %v1703
    %1788 = vmatpush.bf16.msra.mxu0 %v1702
    %1789 = vmatmul.bf16.gmra.mxu0 %v1481
    %v1790 = vpop.f32.mrf.mxu0
    %v1791 = vadd.f32 %v1778, %v1790
    %v1792 = vpop.f32.mrf.mxu0
    %1793 = vdwg.mxu0
    %v1794 = vmax.f32 %v1791, 0.0
    %v1795 = vpack.c.bf16 %v1794, %v1794
    %v1796 = vld [vmem:[#allocation13] sm:$0xf]
    %v1797 = vld [vmem:[#allocation13 + $0x4] sm:$0xf]
    %v1798 = vld [vmem:[#allocation13 + $0x8] sm:$0xf]
    %v1799 = vld [vmem:[#allocation13 + $0xc] sm:$0xf]
    %v1800 = vld [vmem:[#allocation13 + $0x10] sm:$0xf]
    %v1801 = vld [vmem:[#allocation13 + $0x14] sm:$0xf]
    %v1802 = vld [vmem:[#allocation13 + $0x18] sm:$0xf]
    %v1803 = vld [vmem:[#allocation13 + $0x1c] sm:$0xf]
    %v1804 = vld [vmem:[#allocation13 + $0x20] sm:$0xf]
    %v1805 = vld [vmem:[#allocation13 + $0x24] sm:$0xf]
    %v1806 = vld [vmem:[#allocation13 + $0x28] sm:$0xf]
    %v1807 = vld [vmem:[#allocation13 + $0x2c] sm:$0xf]
    %v1808 = vld [vmem:[#allocation13 + $0x30] sm:$0xf]
    %v1809 = vld [vmem:[#allocation13 + $0x34] sm:$0xf]
    %v1810 = vld [vmem:[#allocation13 + $0x38] sm:$0xf]
    %v1811 = vld [vmem:[#allocation13 + $0x3c] sm:$0xf]
    %v1812 = vld [vmem:[#allocation15] sm:$0x1]
    %v1814 = vperm.slane %v1812, 0
    %v1832 = vunpack.c.l.b16 %v1796
    %v1833 = vunpack.c.l.b16 %v1797
    %v1834 = vunpack.c.l.b16 %v1798
    %v1835 = vunpack.c.l.b16 %v1799
    %v1836 = vunpack.c.l.b16 %v1800
    %v1837 = vunpack.c.l.b16 %v1801
    %v1838 = vunpack.c.l.b16 %v1802
    %v1839 = vunpack.c.l.b16 %v1803
    %v1840 = vunpack.c.l.b16 %v1804
    %v1841 = vunpack.c.l.b16 %v1805
    %v1842 = vunpack.c.l.b16 %v1806
    %v1843 = vunpack.c.l.b16 %v1807
    %v1844 = vunpack.c.l.b16 %v1808
    %v1845 = vunpack.c.l.b16 %v1809
    %v1846 = vunpack.c.l.b16 %v1810
    %v1847 = vunpack.c.l.b16 %v1811
    %v1848 = vpack.c.b16 %v1833, %v1832
    %v1849 = vpack.c.b16 %v1835, %v1834
    %v1850 = vpack.c.b16 %v1837, %v1836
    %v1851 = vpack.c.b16 %v1839, %v1838
    %v1852 = vpack.c.b16 %v1841, %v1840
    %v1853 = vpack.c.b16 %v1843, %v1842
    %v1854 = vpack.c.b16 %v1845, %v1844
    %v1855 = vpack.c.b16 %v1847, %v1846
    %1864 = vmatpush.bf16.msra.mxu0 %v1855
    %1865 = vmatpush.bf16.msra.mxu0 %v1854
    %1866 = vmatpush.bf16.msra.mxu0 %v1853
    %1867 = vmatpush.bf16.msra.mxu0 %v1852
    %1868 = vmatpush.bf16.msra.mxu0 %v1851
    %1869 = vmatpush.bf16.msra.mxu0 %v1850
    %1870 = vmatpush.bf16.msra.mxu0 %v1849
    %1871 = vmatpush.bf16.msra.mxu0 %v1848
    %1872 = vmatmul.bf16.gmra.mxu0 %v1795
    %v1873 = vpop.f32.mrf.mxu0
    %v1874 = vadd.f32 %v1814, %v1873
    %v1875 = vpop.f32.mrf.mxu0
    %1876 = vdwg.mxu0
    %v1877 = vtanh.pop %v1874
    %1878 = vst [vmem:[%s12] sm:$0xff] %v1877
    // Predicated region
    $region86: #{actor_forward.1} parent=1 // pred_check
      _
    $region87: #{actor_forward.1} parent=1 // pred_check_branch
      %1880 = sbr.rel (0) target = $region89
    $region88: #{actor_forward.1} parent=1 // pred_region
      _
    $region89: #{actor_forward.1} parent=1 // pred_fallthru
      _
    // Predicated region
    $region90: #{actor_forward.1} parent=1 // pred_check
      _
    $region91: #{actor_forward.1} parent=1 // pred_check_branch
      %1882 = sbr.rel (0) target = $region93
    $region92: #{actor_forward.1} parent=1 // pred_region
      _
    $region93: #{actor_forward.1} parent=1 // pred_fallthru
      _
    %1883 = vsyncpa [#allocation3], 1
    %1884 = vsyncpa [#allocation5], 1
    %1885 = vsyncpa [#allocation8], 1
    %1886 = vsyncpa [#allocation11], 1
    %1887 = vsyncpa [#allocation14], 1

</llo_original>
